<compile_context>
chip_gen: v7x
topology: tpu7x:2x2x1
jax: 0.10.0
libtpu: 0.0.40
codegen_flags: <defaults>
</compile_context>

<pallas_src>
import jax
import jax.numpy as jnp
from jax.experimental import pallas as pl
from jax.experimental.pallas import tpu as pltpu

_VMEM = pl.BlockSpec(memory_space=pltpu.MemorySpace.VMEM)


# ----------------------------- Pallas kernels ------------------------------

def _conv1_pool_kernel(w_ref, b_ref, x_ref, o_ref):
    """Fused 1x1 conv (C_in=1) + ReLU + MaxPool2d(2,2), pure VPU.

    x_ref: (1, 4, P) bf16 -- the four 2x2 pool-window candidates of one sample.
    Because the bias is shared across the window and ReLU is monotone,
    pool(relu(w*x+b)) == relu(w*max(x) + b) for w>=0 and relu(w*min(x) + b) for w<0.
    """
    xc = x_ref[0].astype(jnp.float32)                 # (4, P)
    xmax = jnp.max(xc, axis=0, keepdims=True)         # (1, P)
    xmin = jnp.min(xc, axis=0, keepdims=True)         # (1, P)
    w = w_ref[...]                                    # (C_out, 1) f32
    b = b_ref[...]                                    # (C_out, 1) f32
    y = jnp.where(w >= 0.0, w * xmax, w * xmin) + b   # (C_out, P)
    o_ref[0] = jnp.maximum(y, 0.0).astype(o_ref.dtype)


def _conv2_pool_kernel(w_ref, b_ref, x_ref, o_ref):
    """Fused Conv2d(k=2,s=2) + ReLU + MaxPool2d(2,2) as ONE MXU matmul.

    x_ref: (K, 4*P) bf16 -- im2col patches for the four pool candidates concatenated
    along the lane axis; one dot amortizes the MXU weight load / result drain.
    """
    y = jnp.dot(w_ref[...], x_ref[...], preferred_element_type=jnp.float32)  # (C, 4P)
    p = y.shape[1] // 4
    m = jnp.maximum(jnp.maximum(y[:, 0:p], y[:, p:2 * p]),
                    jnp.maximum(y[:, 2 * p:3 * p], y[:, 3 * p:4 * p]))
    o_ref[...] = jnp.maximum(m + b_ref[...], 0.0)


def _tail_kernel(x3_ref, w3_ref, b3_ref, wf1_ref, bf1_ref, wf2_ref, bf2_ref,
                 wf3_ref, bf3_ref, o_ref, f_ref):
    """Fused conv3(2x2,s2)+ReLU+pool(2,2) + flatten + fc1+ReLU + fc2+ReLU + fc3.

    x3_ref: (4*n_pos*N, K3) conv3 patches, rows ordered (pool_cand, position, sample).
    The flatten permutation is folded into fc1's (pre-permuted) weight columns, so the
    in-kernel flatten is just n_pos contiguous row-block copies into a VMEM scratch.
    """
    y = jnp.dot(x3_ref[...], w3_ref[...], preferred_element_type=jnp.float32)
    n = o_ref.shape[0]                 # batch
    g = y.shape[0] // 4                # rows per pool candidate = n_pos * n
    n_pos = g // n                     # spatial positions after pool3 (3*4 = 12)
    c3 = y.shape[1]                    # conv3 out channels (6)
    m = jnp.maximum(jnp.maximum(y[0:g], y[g:2 * g]),
                    jnp.maximum(y[2 * g:3 * g], y[3 * g:4 * g]))
    p3 = jnp.maximum(m + b3_ref[...], 0.0)            # (n_pos*n, c3), rows=(pos, sample)
    for pos in range(n_pos):                          # torch.flatten(x, 1)
        f_ref[:, c3 * pos:c3 * (pos + 1)] = p3[pos * n:(pos + 1) * n, :]
    feat = f_ref[...]                                 # (n, 72), features on lanes
    h = jnp.dot(feat, wf1_ref[...], preferred_element_type=jnp.float32) + bf1_ref[...]
    h = jnp.maximum(h, 0.0)
    h = jnp.dot(h, wf2_ref[...], preferred_element_type=jnp.float32) + bf2_ref[...]
    h = jnp.maximum(h, 0.0)
    o_ref[...] = jnp.dot(h, wf3_ref[...], preferred_element_type=jnp.float32) + bf3_ref[...]


# ------------------------------- glue layers --------------------------------

def conv1_relu_pool(x, w1, b1):
    """Conv2d(1,3,k=1) + ReLU + MaxPool2d(2,2) -> (N, 3, (H//2)*(W//2)) bf16."""
    N, C, H, W = x.shape
    assert C == 1 and H % 2 == 0 and W % 2 == 0
    Hp, Wp, co = H // 2, W // 2, w1.shape[0]
    P = Hp * Wp
    # Contiguous split of H and W into (pooled, parity); one small transpose puts the
    # four 2x2-window candidates on a leading axis (no strided gathers, no padding).
    cand = x.reshape(N, Hp, 2, Wp, 2).transpose(0, 2, 4, 1, 3)
    cand = cand.reshape(N, 4, P).astype(jnp.bfloat16)
    return pl.pallas_call(
        _conv1_pool_kernel,
        out_shape=jax.ShapeDtypeStruct((N, co, P), jnp.bfloat16),
        grid=(N,),
        in_specs=[
            pl.BlockSpec((co, 1), lambda n: (0, 0)),
            pl.BlockSpec((co, 1), lambda n: (0, 0)),
            pl.BlockSpec((1, 4, P), lambda n: (n, 0, 0)),
        ],
        out_specs=pl.BlockSpec((1, co, P), lambda n: (n, 0, 0)),
        compiler_params=pltpu.CompilerParams(dimension_semantics=("parallel",)),
    )(w1.reshape(co, 1).astype(jnp.float32),
      b1.reshape(co, 1).astype(jnp.float32),
      cand)


def conv2_relu_pool(p1, w2, b2, Hp, Wp):
    """Conv2d(3,6,2,s=2) + ReLU + MaxPool2d(2,2); single bf16 matmul, f32 accumulate."""
    N = p1.shape[0]
    co, ci, kh, kw = w2.shape
    assert (kh, kw) == (2, 2) and Hp % 4 == 0 and Wp % 4 == 0
    K = ci * kh * kw
    H2, W2 = Hp // 4, Wp // 4
    P2 = N * H2 * W2
    # im2col for the 4 pool candidates, concatenated on the lane axis (one dot).
    # Row index of p1's spatial dims: h = 4*i + 2*di + dh, w = 4*j + 2*dj + dw.
    t = p1.reshape(N, ci, H2, 2, 2, W2, 2, 2)               # (n,cin,i,di,dh,j,dj,dw)
    x2 = t.transpose(1, 4, 7, 3, 6, 0, 2, 5).reshape(K, 4 * P2)   # bf16, no padding
    out = pl.pallas_call(
        _conv2_pool_kernel,
        out_shape=jax.ShapeDtypeStruct((co, P2), jnp.float32),
        in_specs=[_VMEM, _VMEM, _VMEM],
        out_specs=_VMEM,
    )(w2.reshape(co, K).astype(jnp.bfloat16),
      b2.reshape(co, 1).astype(jnp.float32),
      x2)
    return out, H2, W2


def conv3_fc_tail(p2, params, N, H2, W2):
    """Fused conv3+ReLU+pool + flatten + fc1+ReLU + fc2+ReLU + fc3 (one pallas_call)."""
    co, ci, kh, kw = params["conv3_w"].shape
    assert (kh, kw) == (2, 2) and H2 % 4 == 0 and W2 % 4 == 0
    K = ci * kh * kw
    H3, W3 = H2 // 4, W2 // 4
    n_pos = H3 * W3
    assert params["fc1_w"].shape[1] == co * n_pos           # 6*3*4 == 72
    t = p2.reshape(ci, N, H3, 2, 2, W3, 2, 2)               # (cin,n,i,di,dh,j,dj,dw)
    x3 = t.transpose(3, 6, 2, 5, 1, 0, 4, 7).reshape(4 * n_pos * N, K)
    # Fold the NCHW flatten order (c*n_pos + pos) into fc1's columns so the kernel
    # uses its natural (pos, c) ordering and needs no in-kernel transpose.
    fc1_wp = params["fc1_w"].reshape(-1, co, n_pos).transpose(0, 2, 1)
    fc1_wp = fc1_wp.reshape(params["fc1_w"].shape[0], co * n_pos)
    n_cls = params["fc3_w"].shape[0]
    return pl.pallas_call(
        _tail_kernel,
        out_shape=jax.ShapeDtypeStruct((N, n_cls), jnp.float32),
        in_specs=[_VMEM] * 9,
        out_specs=_VMEM,
        scratch_shapes=[pltpu.VMEM((N, co * n_pos), jnp.float32)],
    )(x3,
      params["conv3_w"].reshape(co, K).T,
      params["conv3_b"].reshape(1, co),
      fc1_wp.T, params["fc1_b"].reshape(1, -1),
      params["fc2_w"].T, params["fc2_b"].reshape(1, -1),
      params["fc3_w"].T, params["fc3_b"].reshape(1, -1))


# ------------------------------ model forward -------------------------------

@jax.jit
def cnn_forward(params, x):
    N, _, H, W = x.shape
    o1 = conv1_relu_pool(x, params["conv1_w"], params["conv1_b"])
    o2, H2, W2 = conv2_relu_pool(o1, params["conv2_w"], params["conv2_b"], H // 2, W // 2)
    return conv3_fc_tail(o2, params, N, H2, W2)


def init_params(key):
    """Deterministic PyTorch-style uniform(-1/sqrt(fan_in), 1/sqrt(fan_in)) init."""
    def uni(k, shape, fan_in):
        bound = 1.0 / (fan_in ** 0.5)
        return jax.random.uniform(k, shape, jnp.float32, -bound, bound)

    ks = jax.random.split(key, 12)
    return {
        "conv1_w": uni(ks[0], (3, 1, 1, 1), 1 * 1 * 1),
        "conv1_b": uni(ks[1], (3,), 1 * 1 * 1),
        "conv2_w": uni(ks[2], (6, 3, 2, 2), 3 * 2 * 2),
        "conv2_b": uni(ks[3], (6,), 3 * 2 * 2),
        "conv3_w": uni(ks[4], (6, 6, 2, 2), 6 * 2 * 2),
        "conv3_b": uni(ks[5], (6,), 6 * 2 * 2),
        "fc1_w": uni(ks[6], (64, 72), 72),
        "fc1_b": uni(ks[7], (64,), 72),
        "fc2_w": uni(ks[8], (64, 64), 64),
        "fc2_b": uni(ks[9], (64,), 64),
        "fc3_w": uni(ks[10], (2, 64), 64),
        "fc3_b": uni(ks[11], (2,), 64),
    }


if __name__ == "__main__":
    key = jax.random.PRNGKey(0)
    pkey, xkey = jax.random.split(key)
    params = init_params(pkey)

    # NCHW input: 96x128 so that after the three conv+pool stages the flattened
    # feature size is 6 * 3 * 4 = 72, matching fc1's in_features=72.
    x = jax.random.normal(xkey, (2, 1, 96, 128), jnp.float32)

    out = cnn_forward(params, x)
    jax.block_until_ready(out)
    assert out.shape == (2, 2) and out.dtype == jnp.float32
    print("KERNEL_OK")
</pallas_src>

<mosaic_0001>
module attributes {stable_mosaic.version = 11 : i64} {
  func.func @_conv1_pool_kernel(%arg0: i32, %arg1: memref<3x1xf32, #tpu.memory_space<vmem>>, %arg2: memref<3x1xf32, #tpu.memory_space<vmem>>, %arg3: memref<1x4x3072xbf16, #tpu.memory_space<vmem>>, %arg4: memref<1x3x3072xbf16, #tpu.memory_space<vmem>>) attributes {dimension_semantics = [#tpu.dimension_semantics<parallel>], iteration_bounds = array<i64: 2>, scalar_prefetch = 0 : i64, scratch_operands = 0 : i64, tpu.core_type = #tpu.core_type<tc>, window_params = [{pipeline_mode = #tpu.pipeline_mode<synchronous>, transform_indices = @transform_0, window_bounds = array<i64: 3, 1>}, {pipeline_mode = #tpu.pipeline_mode<synchronous>, transform_indices = @transform_1, window_bounds = array<i64: 3, 1>}, {transform_indices = @transform_2, window_bounds = array<i64: 1, 4, 3072>}, {transform_indices = @transform_3, window_bounds = array<i64: 1, 3, 3072>}]} {
    %c0 = arith.constant 0 : index
    %c0_0 = arith.constant 0 : index
    %c0_1 = arith.constant 0 : index
    %0 = vector.load %arg3[%c0, %c0_0, %c0_1] : memref<1x4x3072xbf16, #tpu.memory_space<vmem>>, vector<1x4x3072xbf16>
    %1 = vector.shape_cast %0 : vector<1x4x3072xbf16> to vector<4x3072xbf16>
    %2 = arith.extf %1 : vector<4x3072xbf16> to vector<4x3072xf32>
    %cst = arith.constant dense<0xFF800000> : vector<3072xf32>
    %3 = vector.multi_reduction <maximumf>, %2, %cst [0] : vector<4x3072xf32> to vector<3072xf32>
    %4 = vector.shape_cast %3 : vector<3072xf32> to vector<1x3072xf32>
    %cst_2 = arith.constant dense<0x7F800000> : vector<3072xf32>
    %5 = vector.multi_reduction <minimumf>, %2, %cst_2 [0] : vector<4x3072xf32> to vector<3072xf32>
    %6 = vector.shape_cast %5 : vector<3072xf32> to vector<1x3072xf32>
    %c0_3 = arith.constant 0 : index
    %c0_4 = arith.constant 0 : index
    %7 = vector.load %arg1[%c0_3, %c0_4] : memref<3x1xf32, #tpu.memory_space<vmem>>, vector<3x1xf32>
    %c0_5 = arith.constant 0 : index
    %c0_6 = arith.constant 0 : index
    %8 = vector.load %arg2[%c0_5, %c0_6] : memref<3x1xf32, #tpu.memory_space<vmem>>, vector<3x1xf32>
    %cst_7 = arith.constant 0.000000e+00 : f32
    %9 = vector.broadcast %cst_7 : f32 to vector<3x1xf32>
    %10 = arith.cmpf oge, %7, %9 : vector<3x1xf32>
    %11 = vector.broadcast %7 : vector<3x1xf32> to vector<3x3072xf32>
    %12 = vector.broadcast %4 : vector<1x3072xf32> to vector<3x3072xf32>
    %13 = arith.mulf %11, %12 : vector<3x3072xf32>
    %14 = vector.broadcast %7 : vector<3x1xf32> to vector<3x3072xf32>
    %15 = vector.broadcast %6 : vector<1x3072xf32> to vector<3x3072xf32>
    %16 = arith.mulf %14, %15 : vector<3x3072xf32>
    %17 = vector.shape_cast %10 : vector<3x1xi1> to vector<3x1xi1>
    %18 = vector.broadcast %17 : vector<3x1xi1> to vector<3x3072xi1>
    %19 = arith.select %18, %13, %16 : vector<3x3072xi1>, vector<3x3072xf32>
    %20 = vector.broadcast %8 : vector<3x1xf32> to vector<3x3072xf32>
    %21 = arith.addf %19, %20 : vector<3x3072xf32>
    %cst_8 = arith.constant 0.000000e+00 : f32
    %22 = vector.broadcast %cst_8 : f32 to vector<3x3072xf32>
    %23 = arith.maximumf %21, %22 : vector<3x3072xf32>
    %24 = arith.truncf %23 : vector<3x3072xf32> to vector<3x3072xbf16>
    %c0_9 = arith.constant 0 : index
    %c0_10 = arith.constant 0 : index
    %c0_11 = arith.constant 0 : index
    %25 = vector.load %arg4[%c0_9, %c0_10, %c0_11] : memref<1x3x3072xbf16, #tpu.memory_space<vmem>>, vector<1x3x3072xbf16>
    %26 = vector.shape_cast %25 : vector<1x3x3072xbf16> to vector<3x3072xbf16>
    %27 = vector.shape_cast %24 : vector<3x3072xbf16> to vector<1x3x3072xbf16>
    tpu.vector_store %arg4[%c0_9, %c0_10, %c0_11], %27 {strides = array<i32>} : memref<1x3x3072xbf16, #tpu.memory_space<vmem>>, vector<1x3x3072xbf16>,
    return
  }
  func.func @transform_0(%arg0: i32) -> (i32, i32) {
    %c0_i32 = arith.constant 0 : i32
    %c0_i32_0 = arith.constant 0 : i32
    %c0_i32_1 = arith.constant 0 : i32
    return %c0_i32, %c0_i32_0 : i32, i32
  }
  func.func @transform_1(%arg0: i32) -> (i32, i32) {
    %c0_i32 = arith.constant 0 : i32
    %c0_i32_0 = arith.constant 0 : i32
    %c0_i32_1 = arith.constant 0 : i32
    return %c0_i32, %c0_i32_0 : i32, i32
  }
  func.func @transform_2(%arg0: i32) -> (i32, i32, i32) {
    %c0_i32 = arith.constant 0 : i32
    %c0_i32_0 = arith.constant 0 : i32
    %c0_i32_1 = arith.constant 0 : i32
    return %arg0, %c0_i32, %c0_i32_0 : i32, i32, i32
  }
  func.func @transform_3(%arg0: i32) -> (i32, i32, i32) {
    %c0_i32 = arith.constant 0 : i32
    %c0_i32_0 = arith.constant 0 : i32
    %c0_i32_1 = arith.constant 0 : i32
    return %arg0, %c0_i32, %c0_i32_0 : i32, i32, i32
  }
}

module attributes {stable_mosaic.version = 11 : i64} {
  func.func @_conv2_pool_kernel(%arg0: memref<6x12xbf16, #tpu.memory_space<vmem>>, %arg1: memref<6x1xf32, #tpu.memory_space<vmem>>, %arg2: memref<12x1536xbf16, #tpu.memory_space<vmem>>, %arg3: memref<6x384xf32, #tpu.memory_space<vmem>>) attributes {dimension_semantics = [], scalar_prefetch = 0 : i64, scratch_operands = 0 : i64, tpu.core_type = #tpu.core_type<tc>} {
    %c0 = arith.constant 0 : index
    %c0_0 = arith.constant 0 : index
    %0 = vector.load %arg0[%c0, %c0_0] : memref<6x12xbf16, #tpu.memory_space<vmem>>, vector<6x12xbf16>
    %c0_1 = arith.constant 0 : index
    %c0_2 = arith.constant 0 : index
    %1 = vector.load %arg2[%c0_1, %c0_2] : memref<12x1536xbf16, #tpu.memory_space<vmem>>, vector<12x1536xbf16>
    %cst = arith.constant dense<0.000000e+00> : vector<6x1536xf32>
    %2 = tpu.matmul %0, %1, %cst {dimension_numbers = #tpu.dot_dimension_numbers<[1], [0], [0], [1], [0, 0, 1, 1], [], []>} : vector<6x12xbf16>, vector<12x1536xbf16>, vector<6x1536xf32> -> vector<6x1536xf32>
    %3 = vector.extract_strided_slice %2 {offsets = [0, 0], sizes = [6, 384], strides = [1, 1]} : vector<6x1536xf32> to vector<6x384xf32>
    %4 = vector.extract_strided_slice %2 {offsets = [0, 384], sizes = [6, 384], strides = [1, 1]} : vector<6x1536xf32> to vector<6x384xf32>
    %5 = arith.maximumf %3, %4 : vector<6x384xf32>
    %6 = vector.extract_strided_slice %2 {offsets = [0, 768], sizes = [6, 384], strides = [1, 1]} : vector<6x1536xf32> to vector<6x384xf32>
    %7 = vector.extract_strided_slice %2 {offsets = [0, 1152], sizes = [6, 384], strides = [1, 1]} : vector<6x1536xf32> to vector<6x384xf32>
    %8 = arith.maximumf %6, %7 : vector<6x384xf32>
    %9 = arith.maximumf %5, %8 : vector<6x384xf32>
    %c0_3 = arith.constant 0 : index
    %c0_4 = arith.constant 0 : index
    %10 = vector.load %arg1[%c0_3, %c0_4] : memref<6x1xf32, #tpu.memory_space<vmem>>, vector<6x1xf32>
    %11 = vector.broadcast %10 : vector<6x1xf32> to vector<6x384xf32>
    %12 = arith.addf %9, %11 : vector<6x384xf32>
    %cst_5 = arith.constant 0.000000e+00 : f32
    %13 = vector.broadcast %cst_5 : f32 to vector<6x384xf32>
    %14 = arith.maximumf %12, %13 : vector<6x384xf32>
    %c0_6 = arith.constant 0 : index
    %c0_7 = arith.constant 0 : index
    %15 = vector.load %arg3[%c0_6, %c0_7] : memref<6x384xf32, #tpu.memory_space<vmem>>, vector<6x384xf32>
    tpu.vector_store %arg3[%c0_6, %c0_7], %14 {strides = array<i32>} : memref<6x384xf32, #tpu.memory_space<vmem>>, vector<6x384xf32>,
    return
  }
}

module attributes {stable_mosaic.version = 11 : i64} {
  func.func @_tail_kernel(%arg0: memref<96x24xf32, #tpu.memory_space<vmem>>, %arg1: memref<24x6xf32, #tpu.memory_space<vmem>>, %arg2: memref<1x6xf32, #tpu.memory_space<vmem>>, %arg3: memref<72x64xf32, #tpu.memory_space<vmem>>, %arg4: memref<1x64xf32, #tpu.memory_space<vmem>>, %arg5: memref<64x64xf32, #tpu.memory_space<vmem>>, %arg6: memref<1x64xf32, #tpu.memory_space<vmem>>, %arg7: memref<64x2xf32, #tpu.memory_space<vmem>>, %arg8: memref<1x2xf32, #tpu.memory_space<vmem>>, %arg9: memref<2x2xf32, #tpu.memory_space<vmem>>, %arg10: memref<2x72xf32, #tpu.memory_space<vmem>>) attributes {dimension_semantics = [], scalar_prefetch = 0 : i64, scratch_operands = 1 : i64, tpu.core_type = #tpu.core_type<tc>} {
    %c0 = arith.constant 0 : index
    %c0_0 = arith.constant 0 : index
    %0 = vector.load %arg0[%c0, %c0_0] : memref<96x24xf32, #tpu.memory_space<vmem>>, vector<96x24xf32>
    %c0_1 = arith.constant 0 : index
    %c0_2 = arith.constant 0 : index
    %1 = vector.load %arg1[%c0_1, %c0_2] : memref<24x6xf32, #tpu.memory_space<vmem>>, vector<24x6xf32>
    %cst = arith.constant dense<0.000000e+00> : vector<96x6xf32>
    %2 = tpu.matmul %0, %1, %cst {dimension_numbers = #tpu.dot_dimension_numbers<[1], [0], [0], [1], [0, 0, 1, 1], [], []>} : vector<96x24xf32>, vector<24x6xf32>, vector<96x6xf32> -> vector<96x6xf32>
    %3 = vector.extract_strided_slice %2 {offsets = [0, 0], sizes = [24, 6], strides = [1, 1]} : vector<96x6xf32> to vector<24x6xf32>
    %4 = vector.extract_strided_slice %2 {offsets = [24, 0], sizes = [24, 6], strides = [1, 1]} : vector<96x6xf32> to vector<24x6xf32>
    %5 = arith.maximumf %3, %4 : vector<24x6xf32>
    %6 = vector.extract_strided_slice %2 {offsets = [48, 0], sizes = [24, 6], strides = [1, 1]} : vector<96x6xf32> to vector<24x6xf32>
    %7 = vector.extract_strided_slice %2 {offsets = [72, 0], sizes = [24, 6], strides = [1, 1]} : vector<96x6xf32> to vector<24x6xf32>
    %8 = arith.maximumf %6, %7 : vector<24x6xf32>
    %9 = arith.maximumf %5, %8 : vector<24x6xf32>
    %c0_3 = arith.constant 0 : index
    %c0_4 = arith.constant 0 : index
    %10 = vector.load %arg2[%c0_3, %c0_4] : memref<1x6xf32, #tpu.memory_space<vmem>>, vector<1x6xf32>
    %11 = vector.broadcast %10 : vector<1x6xf32> to vector<24x6xf32>
    %12 = arith.addf %9, %11 : vector<24x6xf32>
    %cst_5 = arith.constant 0.000000e+00 : f32
    %13 = vector.broadcast %cst_5 : f32 to vector<24x6xf32>
    %14 = arith.maximumf %12, %13 : vector<24x6xf32>
    %15 = vector.extract_strided_slice %14 {offsets = [0, 0], sizes = [2, 6], strides = [1, 1]} : vector<24x6xf32> to vector<2x6xf32>
    %c0_6 = arith.constant 0 : index
    %c0_7 = arith.constant 0 : index
    %16 = vector.load %arg10[%c0_6, %c0_7] : memref<2x72xf32, #tpu.memory_space<vmem>>, vector<2x6xf32>
    tpu.vector_store %arg10[%c0_6, %c0_7], %15 {strides = array<i32>} : memref<2x72xf32, #tpu.memory_space<vmem>>, vector<2x6xf32>,
    %17 = vector.extract_strided_slice %14 {offsets = [2, 0], sizes = [2, 6], strides = [1, 1]} : vector<24x6xf32> to vector<2x6xf32>
    %c0_8 = arith.constant 0 : index
    %c6 = arith.constant 6 : index
    %18 = vector.load %arg10[%c0_8, %c6] : memref<2x72xf32, #tpu.memory_space<vmem>>, vector<2x6xf32>
    tpu.vector_store %arg10[%c0_8, %c6], %17 {strides = array<i32>} : memref<2x72xf32, #tpu.memory_space<vmem>>, vector<2x6xf32>,
    %19 = vector.extract_strided_slice %14 {offsets = [4, 0], sizes = [2, 6], strides = [1, 1]} : vector<24x6xf32> to vector<2x6xf32>
    %c0_9 = arith.constant 0 : index
    %c12 = arith.constant 12 : index
    %20 = vector.load %arg10[%c0_9, %c12] : memref<2x72xf32, #tpu.memory_space<vmem>>, vector<2x6xf32>
    tpu.vector_store %arg10[%c0_9, %c12], %19 {strides = array<i32>} : memref<2x72xf32, #tpu.memory_space<vmem>>, vector<2x6xf32>,
    %21 = vector.extract_strided_slice %14 {offsets = [6, 0], sizes = [2, 6], strides = [1, 1]} : vector<24x6xf32> to vector<2x6xf32>
    %c0_10 = arith.constant 0 : index
    %c18 = arith.constant 18 : index
    %22 = vector.load %arg10[%c0_10, %c18] : memref<2x72xf32, #tpu.memory_space<vmem>>, vector<2x6xf32>
    tpu.vector_store %arg10[%c0_10, %c18], %21 {strides = array<i32>} : memref<2x72xf32, #tpu.memory_space<vmem>>, vector<2x6xf32>,
    %23 = vector.extract_strided_slice %14 {offsets = [8, 0], sizes = [2, 6], strides = [1, 1]} : vector<24x6xf32> to vector<2x6xf32>
    %c0_11 = arith.constant 0 : index
    %c24 = arith.constant 24 : index
    %24 = vector.load %arg10[%c0_11, %c24] : memref<2x72xf32, #tpu.memory_space<vmem>>, vector<2x6xf32>
    tpu.vector_store %arg10[%c0_11, %c24], %23 {strides = array<i32>} : memref<2x72xf32, #tpu.memory_space<vmem>>, vector<2x6xf32>,
    %25 = vector.extract_strided_slice %14 {offsets = [10, 0], sizes = [2, 6], strides = [1, 1]} : vector<24x6xf32> to vector<2x6xf32>
    %c0_12 = arith.constant 0 : index
    %c30 = arith.constant 30 : index
    %26 = vector.load %arg10[%c0_12, %c30] : memref<2x72xf32, #tpu.memory_space<vmem>>, vector<2x6xf32>
    tpu.vector_store %arg10[%c0_12, %c30], %25 {strides = array<i32>} : memref<2x72xf32, #tpu.memory_space<vmem>>, vector<2x6xf32>,
    %27 = vector.extract_strided_slice %14 {offsets = [12, 0], sizes = [2, 6], strides = [1, 1]} : vector<24x6xf32> to vector<2x6xf32>
    %c0_13 = arith.constant 0 : index
    %c36 = arith.constant 36 : index
    %28 = vector.load %arg10[%c0_13, %c36] : memref<2x72xf32, #tpu.memory_space<vmem>>, vector<2x6xf32>
    tpu.vector_store %arg10[%c0_13, %c36], %27 {strides = array<i32>} : memref<2x72xf32, #tpu.memory_space<vmem>>, vector<2x6xf32>,
    %29 = vector.extract_strided_slice %14 {offsets = [14, 0], sizes = [2, 6], strides = [1, 1]} : vector<24x6xf32> to vector<2x6xf32>
    %c0_14 = arith.constant 0 : index
    %c42 = arith.constant 42 : index
    %30 = vector.load %arg10[%c0_14, %c42] : memref<2x72xf32, #tpu.memory_space<vmem>>, vector<2x6xf32>
    tpu.vector_store %arg10[%c0_14, %c42], %29 {strides = array<i32>} : memref<2x72xf32, #tpu.memory_space<vmem>>, vector<2x6xf32>,
    %31 = vector.extract_strided_slice %14 {offsets = [16, 0], sizes = [2, 6], strides = [1, 1]} : vector<24x6xf32> to vector<2x6xf32>
    %c0_15 = arith.constant 0 : index
    %c48 = arith.constant 48 : index
    %32 = vector.load %arg10[%c0_15, %c48] : memref<2x72xf32, #tpu.memory_space<vmem>>, vector<2x6xf32>
    tpu.vector_store %arg10[%c0_15, %c48], %31 {strides = array<i32>} : memref<2x72xf32, #tpu.memory_space<vmem>>, vector<2x6xf32>,
    %33 = vector.extract_strided_slice %14 {offsets = [18, 0], sizes = [2, 6], strides = [1, 1]} : vector<24x6xf32> to vector<2x6xf32>
    %c0_16 = arith.constant 0 : index
    %c54 = arith.constant 54 : index
    %34 = vector.load %arg10[%c0_16, %c54] : memref<2x72xf32, #tpu.memory_space<vmem>>, vector<2x6xf32>
    tpu.vector_store %arg10[%c0_16, %c54], %33 {strides = array<i32>} : memref<2x72xf32, #tpu.memory_space<vmem>>, vector<2x6xf32>,
    %35 = vector.extract_strided_slice %14 {offsets = [20, 0], sizes = [2, 6], strides = [1, 1]} : vector<24x6xf32> to vector<2x6xf32>
    %c0_17 = arith.constant 0 : index
    %c60 = arith.constant 60 : index
    %36 = vector.load %arg10[%c0_17, %c60] : memref<2x72xf32, #tpu.memory_space<vmem>>, vector<2x6xf32>
    tpu.vector_store %arg10[%c0_17, %c60], %35 {strides = array<i32>} : memref<2x72xf32, #tpu.memory_space<vmem>>, vector<2x6xf32>,
    %37 = vector.extract_strided_slice %14 {offsets = [22, 0], sizes = [2, 6], strides = [1, 1]} : vector<24x6xf32> to vector<2x6xf32>
    %c0_18 = arith.constant 0 : index
    %c66 = arith.constant 66 : index
    %38 = vector.load %arg10[%c0_18, %c66] : memref<2x72xf32, #tpu.memory_space<vmem>>, vector<2x6xf32>
    tpu.vector_store %arg10[%c0_18, %c66], %37 {strides = array<i32>} : memref<2x72xf32, #tpu.memory_space<vmem>>, vector<2x6xf32>,
    %c0_19 = arith.constant 0 : index
    %c0_20 = arith.constant 0 : index
    %39 = vector.load %arg10[%c0_19, %c0_20] : memref<2x72xf32, #tpu.memory_space<vmem>>, vector<2x72xf32>
    %c0_21 = arith.constant 0 : index
    %c0_22 = arith.constant 0 : index
    %40 = vector.load %arg3[%c0_21, %c0_22] : memref<72x64xf32, #tpu.memory_space<vmem>>, vector<72x64xf32>
    %cst_23 = arith.constant dense<0.000000e+00> : vector<2x64xf32>
    %41 = tpu.matmul %39, %40, %cst_23 {dimension_numbers = #tpu.dot_dimension_numbers<[1], [0], [0], [1], [0, 0, 1, 1], [], []>} : vector<2x72xf32>, vector<72x64xf32>, vector<2x64xf32> -> vector<2x64xf32>
    %c0_24 = arith.constant 0 : index
    %c0_25 = arith.constant 0 : index
    %42 = vector.load %arg4[%c0_24, %c0_25] : memref<1x64xf32, #tpu.memory_space<vmem>>, vector<1x64xf32>
    %43 = vector.broadcast %42 : vector<1x64xf32> to vector<2x64xf32>
    %44 = arith.addf %41, %43 : vector<2x64xf32>
    %cst_26 = arith.constant 0.000000e+00 : f32
    %45 = vector.broadcast %cst_26 : f32 to vector<2x64xf32>
    %46 = arith.maximumf %44, %45 : vector<2x64xf32>
    %c0_27 = arith.constant 0 : index
    %c0_28 = arith.constant 0 : index
    %47 = vector.load %arg5[%c0_27, %c0_28] : memref<64x64xf32, #tpu.memory_space<vmem>>, vector<64x64xf32>
    %cst_29 = arith.constant dense<0.000000e+00> : vector<2x64xf32>
    %48 = tpu.matmul %46, %47, %cst_29 {dimension_numbers = #tpu.dot_dimension_numbers<[1], [0], [0], [1], [0, 0, 1, 1], [], []>} : vector<2x64xf32>, vector<64x64xf32>, vector<2x64xf32> -> vector<2x64xf32>
    %c0_30 = arith.constant 0 : index
    %c0_31 = arith.constant 0 : index
    %49 = vector.load %arg6[%c0_30, %c0_31] : memref<1x64xf32, #tpu.memory_space<vmem>>, vector<1x64xf32>
    %50 = vector.broadcast %49 : vector<1x64xf32> to vector<2x64xf32>
    %51 = arith.addf %48, %50 : vector<2x64xf32>
    %cst_32 = arith.constant 0.000000e+00 : f32
    %52 = vector.broadcast %cst_32 : f32 to vector<2x64xf32>
    %53 = arith.maximumf %51, %52 : vector<2x64xf32>
    %c0_33 = arith.constant 0 : index
    %c0_34 = arith.constant 0 : index
    %54 = vector.load %arg7[%c0_33, %c0_34] : memref<64x2xf32, #tpu.memory_space<vmem>>, vector<64x2xf32>
    %cst_35 = arith.constant dense<0.000000e+00> : vector<2x2xf32>
    %55 = tpu.matmul %53, %54, %cst_35 {dimension_numbers = #tpu.dot_dimension_numbers<[1], [0], [0], [1], [0, 0, 1, 1], [], []>} : vector<2x64xf32>, vector<64x2xf32>, vector<2x2xf32> -> vector<2x2xf32>
    %c0_36 = arith.constant 0 : index
    %c0_37 = arith.constant 0 : index
    %56 = vector.load %arg8[%c0_36, %c0_37] : memref<1x2xf32, #tpu.memory_space<vmem>>, vector<1x2xf32>
    %57 = vector.broadcast %56 : vector<1x2xf32> to vector<2x2xf32>
    %58 = arith.addf %55, %57 : vector<2x2xf32>
    %c0_38 = arith.constant 0 : index
    %c0_39 = arith.constant 0 : index
    %59 = vector.load %arg9[%c0_38, %c0_39] : memref<2x2xf32, #tpu.memory_space<vmem>>, vector<2x2xf32>
    tpu.vector_store %arg9[%c0_38, %c0_39], %58 {strides = array<i32>} : memref<2x2xf32, #tpu.memory_space<vmem>>, vector<2x2xf32>,
    return
  }
}

</mosaic_0001>

<llo_original>
// kernel: cnn_forward.3
$region0: #{cnn_forward.3}
  #allocation0 [shape = 'u32[]', space=smem, size = 0x4, offset = 0x4, fixed_abs, tag = 'smem constant byte address 0x4 - core index']
  #allocation1 [shape = 'u32[144,128]{1,0:T(1,128)}', space=vmem, size = 0x12000, scoped, tag = 'internal scratch']
  %s0 = inlined_call_operand.vmem [shape: f32[3,1], index: 0, kind: input, shape index: {}]
  %s1 = inlined_call_operand.vmem [shape: f32[3,1], index: 1, kind: input, shape index: {}]
  %s2 = inlined_call_operand.vmem [shape: bf16[2,4,3072], index: 2, kind: input, shape index: {}]
  %s3 = inlined_call_operand.vmem [shape: bf16[2,3,3072], index: 3, kind: output, shape index: {}]
  %s4 = sld [smem:[#allocation0]]
  $region45: #{cnn_forward.3} parent=0
    _
  %s6 = ssub.s32 1, %s4
  %s7 = scalar_select 0, %s6, %s4
  loop: start=0, step=1, limit=4
  $region2: #{cnn_forward.3} parent=0 // loop_pre_header
    _
  $region3: #{cnn_forward.3} parent=0 // loop_header
    %s9 = sphi 0, %s13
    %p10 = scmp.ge.s32.totalorder %s9, 4
    %s17 = sphi 0, %s17
    %s19 = sphi 0, %s17
    %s20 = sphi 0, %s19
    %s34 = sphi 0, %s20
    %s38 = sphi 0, %s38
    %s40 = sphi 0, %s38
    %s41 = sphi 0, %s40
    %s55 = sphi 0, %s41
    %s61 = sphi 0, %s63
    %s64 = sphi 0, %s61
    %s65 = sphi 0, %s64
    %s81 = sphi 0, %s65
    %s87 = sphi 0, %s89
    %s90 = sphi 0, %s87
    %s91 = sphi 0, %s90
    %s107 = sphi 0, %s91
  $region4: #{cnn_forward.3} parent=0 // loop_header_branch
    %12 = sbr.rel (%p10) target = $region8
  $region5: #{cnn_forward.3} parent=0 // loop_body
    %s14 = ssub.s32 %s9, 1
    %s15 = ssub.s32 %s9, 2
    %s16 = sadd.s32 %s9, 1
    %s18 = sadd.s32 %s17, 1
    %p21 = scmp.eq.s32.totalorder %s9, 1
    %p22 = scmp.ne.s32.totalorder %s17, %s19
    %p23 = scmp.eq.s32.totalorder %s9, 0
    %p24 = por %p22, %p23
    %p25 = scmp.ne.s32.totalorder %s17, %s19
    %p26 = scmp.eq.s32.totalorder %s14, 1
    %p27 = por %p25, %p26
    %p28 = scmp.ne.s32.totalorder %s19, %s20
    %p29 = scmp.eq.s32.totalorder %s14, 0
    %p30 = por %p28, %p29
    %p31 = scmp.ne.s32.totalorder %s19, %s20
    %p32 = scmp.eq.s32.totalorder %s15, 1
    %p33 = por %p31, %p32
    %p35 = scmp.ne.s32.totalorder %s20, %s34
    %p36 = scmp.eq.s32.totalorder %s15, 0
    %p37 = por %p35, %p36
    %s39 = sadd.s32 %s38, 1
    %p42 = scmp.eq.s32.totalorder %s9, 1
    %p43 = scmp.ne.s32.totalorder %s38, %s40
    %p44 = scmp.eq.s32.totalorder %s9, 0
    %p45 = por %p43, %p44
    %p46 = scmp.ne.s32.totalorder %s38, %s40
    %p47 = scmp.eq.s32.totalorder %s14, 1
    %p48 = por %p46, %p47
    %p49 = scmp.ne.s32.totalorder %s40, %s41
    %p50 = scmp.eq.s32.totalorder %s14, 0
    %p51 = por %p49, %p50
    %p52 = scmp.ne.s32.totalorder %s40, %s41
    %p53 = scmp.eq.s32.totalorder %s15, 1
    %p54 = por %p52, %p53
    %p56 = scmp.ne.s32.totalorder %s41, %s55
    %p57 = scmp.eq.s32.totalorder %s15, 0
    %p58 = por %p56, %p57
    %s59 = ssub.s32 %s9, %s16
    %p60 = scmp.eq.s32.totalorder %s59, 0
    %s62 = sadd.s32 %s61, 1
    %s63 = scalar_select %p60, %s61, %s62
    %p66 = pneg %p60
    %p67 = scmp.eq.s32.totalorder %s9, 1
    %p68 = por %p66, %p67
    %p69 = scmp.ne.s32.totalorder %s61, %s64
    %p70 = scmp.eq.s32.totalorder %s9, 0
    %p71 = por %p69, %p70
    %p72 = scmp.ne.s32.totalorder %s61, %s64
    %p73 = scmp.eq.s32.totalorder %s14, 1
    %p74 = por %p72, %p73
    %p75 = scmp.ne.s32.totalorder %s64, %s65
    %p76 = scmp.eq.s32.totalorder %s14, 0
    %p77 = por %p75, %p76
    %p78 = scmp.ne.s32.totalorder %s64, %s65
    %p79 = scmp.eq.s32.totalorder %s15, 1
    %p80 = por %p78, %p79
    %p82 = scmp.ne.s32.totalorder %s65, %s81
    %p83 = scmp.eq.s32.totalorder %s15, 0
    %p84 = por %p82, %p83
    %s85 = ssub.s32 %s9, %s16
    %p86 = scmp.eq.s32.totalorder %s85, 0
    %s88 = sadd.s32 %s87, 1
    %s89 = scalar_select %p86, %s87, %s88
    %p92 = pneg %p86
    %p93 = scmp.eq.s32.totalorder %s9, 1
    %p94 = por %p92, %p93
    %p95 = scmp.ne.s32.totalorder %s87, %s90
    %p96 = scmp.eq.s32.totalorder %s9, 0
    %p97 = por %p95, %p96
    %p98 = scmp.ne.s32.totalorder %s87, %s90
    %p99 = scmp.eq.s32.totalorder %s14, 1
    %p100 = por %p98, %p99
    %p101 = scmp.ne.s32.totalorder %s90, %s91
    %p102 = scmp.eq.s32.totalorder %s14, 0
    %p103 = por %p101, %p102
    %p104 = scmp.ne.s32.totalorder %s90, %s91
    %p105 = scmp.eq.s32.totalorder %s15, 1
    %p106 = por %p104, %p105
    %p108 = scmp.ne.s32.totalorder %s91, %s107
    %p109 = scmp.eq.s32.totalorder %s15, 0
    %p110 = por %p108, %p109
    %p111 = scmp.le.s32.totalorder 1, %s9
    %p112 = scmp.lt.s32.totalorder %s9, 3
    %p113 = pnand %p111, %p112
    %p114 = pneg %p113
    // Predicated region
    $region9: #{cnn_forward.3} parent=5 // pred_check
      _
    $region10: #{cnn_forward.3} parent=5 // pred_check_branch
      %116 = sbr.rel (%p113) target = $region12
    $region11: #{cnn_forward.3} parent=5 // pred_region
      %s117 = ssub.s32 %s9, 1
      // Predicated region
      $region13: #{cnn_forward.3} parent=11 // pred_check
        %p118 = pneg %p30
      $region14: #{cnn_forward.3} parent=11 // pred_check_branch
        %120 = sbr.rel (%p118) target = $region16
      $region15: #{cnn_forward.3} parent=11 // pred_region
        _
      $region16: #{cnn_forward.3} parent=11 // pred_fallthru
        _
      // Predicated region
      $region17: #{cnn_forward.3} parent=11 // pred_check
        %p121 = pneg %p51
      $region18: #{cnn_forward.3} parent=11 // pred_check_branch
        %123 = sbr.rel (%p121) target = $region20
      $region19: #{cnn_forward.3} parent=11 // pred_region
        _
      $region20: #{cnn_forward.3} parent=11 // pred_fallthru
        _
    $region12: #{cnn_forward.3} parent=5 // pred_fallthru
      _
    %p124 = scmp.lt.s32.totalorder %s9, 2
    // Predicated region
    $region21: #{cnn_forward.3} parent=5 // pred_check
      %p125 = pneg %p124
    $region22: #{cnn_forward.3} parent=5 // pred_check_branch
      %127 = sbr.rel (%p125) target = $region24
    $region23: #{cnn_forward.3} parent=5 // pred_region
      // Predicated region
      $region25: #{cnn_forward.3} parent=23 // pred_check
        %p128 = pneg %p71
      $region26: #{cnn_forward.3} parent=23 // pred_check_branch
        %130 = sbr.rel (%p128) target = $region28
      $region27: #{cnn_forward.3} parent=23 // pred_region
        %p131 = scmp.lt.s32.totalorder %s9, 1
        %s132 = scalar_select %p131, %s9, 1
        %s133 = smul.addr %s132, 24
        %s134 = smul.addr %s133, 2
        %s135 = scalar_lea.vmem %s2, %s134
      $region28: #{cnn_forward.3} parent=23 // pred_fallthru
        _
    $region24: #{cnn_forward.3} parent=5 // pred_fallthru
      _
    %p136 = scmp.le.s32.totalorder 1, %s9
    %p137 = scmp.lt.s32.totalorder %s9, 3
    %p138 = pnand %p136, %p137
    %p139 = pneg %p138
    // Predicated region
    $region29: #{cnn_forward.3} parent=5 // pred_check
      _
    $region30: #{cnn_forward.3} parent=5 // pred_check_branch
      %141 = sbr.rel (%p138) target = $region32
    $region31: #{cnn_forward.3} parent=5 // pred_region
      %s142 = ssub.s32 %s9, 1
      %p143 = pneg %p30
      %p144 = pneg %p27
      %p145 = pneg %p51
      %p146 = pneg %p48
      %p147 = scmp.lt.s32.totalorder %s14, 1
      %s148 = scalar_select %p147, %s14, 1
      %s149 = smul.addr %s148, 24
      %s150 = smul.addr %s149, 2
      %s151 = scalar_lea.vmem %s2, %s150
      %p152 = pneg %p77
      %p153 = pneg %p74
      %p154 = pneg %p103
      %p155 = pneg %p100
      %p156 = scmp.lt.s32.totalorder %s14, 1
      %s157 = scalar_select %p156, %s14, 1
      %s158 = smul.addr %s157, 24
      %s159 = smul.addr %s158, 2
      %s160 = scalar_lea.vmem %s3, %s159
      %p161 = scmp.lt.s32.totalorder %s14, 1
      %s162 = scalar_select %p161, %s14, 1
      %s163 = smul.addr %s162, 24
      %s164 = smul.addr %s163, 2
      %s165 = scalar_lea.vmem %s2, %s164
      %p166 = scmp.lt.s32.totalorder %s14, 1
      %s167 = scalar_select %p166, %s14, 1
      %s168 = smul.addr %s167, 24
      %s169 = smul.addr %s168, 2
      %s170 = scalar_lea.vmem %s3, %s169
      %v171 = vld [vmem:[%s165] sm:$0xff]
      %v172 = vld [vmem:[%s165 + $0x8] sm:$0xff]
      %v173 = vld [vmem:[%s165 + $0x10] sm:$0xff]
      %v174 = vld [vmem:[%s165 + $0x18] sm:$0xff]
      %v175 = vld [vmem:[%s165 + $0x20] sm:$0xff]
      %v176 = vld [vmem:[%s165 + $0x28] sm:$0xff]
      %v177 = vunpack.c.l.bf16 %v171
      %v178 = vunpack.c.h.bf16 %v171
      %v179 = vunpack.c.l.bf16 %v172
      %v180 = vunpack.c.h.bf16 %v172
      %v181 = vunpack.c.l.bf16 %v173
      %v182 = vunpack.c.h.bf16 %v173
      %v183 = vunpack.c.l.bf16 %v174
      %v184 = vunpack.c.h.bf16 %v174
      %v185 = vunpack.c.l.bf16 %v175
      %v186 = vunpack.c.h.bf16 %v175
      %v187 = vunpack.c.l.bf16 %v176
      %v188 = vunpack.c.h.bf16 %v176
      %v201 = vcombine.high %v177, %v177
      %v202 = vcombine.high %v178, %v178
      %v203 = vcombine.high %v179, %v179
      %v204 = vcombine.high %v180, %v180
      %v205 = vcombine.high %v181, %v181
      %v206 = vcombine.high %v182, %v182
      %v207 = vcombine.high %v183, %v183
      %v208 = vcombine.high %v184, %v184
      %v209 = vcombine.high %v185, %v185
      %v210 = vcombine.high %v186, %v186
      %v211 = vcombine.high %v187, %v187
      %v212 = vcombine.high %v188, %v188
      %vm225 = vcmask 1043456
      %v226 = vsel %vm225, %v177, -inf
      %v227 = vrot.slane %v226, 4
      %v228 = vmax.f32 %v226, %v227
      %v229 = vrot.slane %v228, 2
      %v230 = vmax.f32 %v228, %v229
      %v231 = vrot.slane %v230, 1
      %v232 = vmax.f32 %v230, %v231
      %v233 = vsel %vm225, %v201, -inf
      %v234 = vrot.slane %v233, 4
      %v235 = vmax.f32 %v233, %v234
      %v236 = vrot.slane %v235, 2
      %v237 = vmax.f32 %v235, %v236
      %v238 = vrot.slane %v237, 1
      %v239 = vmax.f32 %v237, %v238
      %v240 = vsel %vm225, %v178, -inf
      %v241 = vrot.slane %v240, 4
      %v242 = vmax.f32 %v240, %v241
      %v243 = vrot.slane %v242, 2
      %v244 = vmax.f32 %v242, %v243
      %v245 = vrot.slane %v244, 1
      %v246 = vmax.f32 %v244, %v245
      %v247 = vsel %vm225, %v202, -inf
      %v248 = vrot.slane %v247, 4
      %v249 = vmax.f32 %v247, %v248
      %v250 = vrot.slane %v249, 2
      %v251 = vmax.f32 %v249, %v250
      %v252 = vrot.slane %v251, 1
      %v253 = vmax.f32 %v251, %v252
      %v254 = vsel %vm225, %v179, -inf
      %v255 = vrot.slane %v254, 4
      %v256 = vmax.f32 %v254, %v255
      %v257 = vrot.slane %v256, 2
      %v258 = vmax.f32 %v256, %v257
      %v259 = vrot.slane %v258, 1
      %v260 = vmax.f32 %v258, %v259
      %v261 = vsel %vm225, %v203, -inf
      %v262 = vrot.slane %v261, 4
      %v263 = vmax.f32 %v261, %v262
      %v264 = vrot.slane %v263, 2
      %v265 = vmax.f32 %v263, %v264
      %v266 = vrot.slane %v265, 1
      %v267 = vmax.f32 %v265, %v266
      %v268 = vsel %vm225, %v180, -inf
      %v269 = vrot.slane %v268, 4
      %v270 = vmax.f32 %v268, %v269
      %v271 = vrot.slane %v270, 2
      %v272 = vmax.f32 %v270, %v271
      %v273 = vrot.slane %v272, 1
      %v274 = vmax.f32 %v272, %v273
      %v275 = vsel %vm225, %v204, -inf
      %v276 = vrot.slane %v275, 4
      %v277 = vmax.f32 %v275, %v276
      %v278 = vrot.slane %v277, 2
      %v279 = vmax.f32 %v277, %v278
      %v280 = vrot.slane %v279, 1
      %v281 = vmax.f32 %v279, %v280
      %v282 = vsel %vm225, %v181, -inf
      %v283 = vrot.slane %v282, 4
      %v284 = vmax.f32 %v282, %v283
      %v285 = vrot.slane %v284, 2
      %v286 = vmax.f32 %v284, %v285
      %v287 = vrot.slane %v286, 1
      %v288 = vmax.f32 %v286, %v287
      %v289 = vsel %vm225, %v205, -inf
      %v290 = vrot.slane %v289, 4
      %v291 = vmax.f32 %v289, %v290
      %v292 = vrot.slane %v291, 2
      %v293 = vmax.f32 %v291, %v292
      %v294 = vrot.slane %v293, 1
      %v295 = vmax.f32 %v293, %v294
      %v296 = vsel %vm225, %v182, -inf
      %v297 = vrot.slane %v296, 4
      %v298 = vmax.f32 %v296, %v297
      %v299 = vrot.slane %v298, 2
      %v300 = vmax.f32 %v298, %v299
      %v301 = vrot.slane %v300, 1
      %v302 = vmax.f32 %v300, %v301
      %v303 = vsel %vm225, %v206, -inf
      %v304 = vrot.slane %v303, 4
      %v305 = vmax.f32 %v303, %v304
      %v306 = vrot.slane %v305, 2
      %v307 = vmax.f32 %v305, %v306
      %v308 = vrot.slane %v307, 1
      %v309 = vmax.f32 %v307, %v308
      %v310 = vsel %vm225, %v183, -inf
      %v311 = vrot.slane %v310, 4
      %v312 = vmax.f32 %v310, %v311
      %v313 = vrot.slane %v312, 2
      %v314 = vmax.f32 %v312, %v313
      %v315 = vrot.slane %v314, 1
      %v316 = vmax.f32 %v314, %v315
      %v317 = vsel %vm225, %v207, -inf
      %v318 = vrot.slane %v317, 4
      %v319 = vmax.f32 %v317, %v318
      %v320 = vrot.slane %v319, 2
      %v321 = vmax.f32 %v319, %v320
      %v322 = vrot.slane %v321, 1
      %v323 = vmax.f32 %v321, %v322
      %v324 = vsel %vm225, %v184, -inf
      %v325 = vrot.slane %v324, 4
      %v326 = vmax.f32 %v324, %v325
      %v327 = vrot.slane %v326, 2
      %v328 = vmax.f32 %v326, %v327
      %v329 = vrot.slane %v328, 1
      %v330 = vmax.f32 %v328, %v329
      %v331 = vsel %vm225, %v208, -inf
      %v332 = vrot.slane %v331, 4
      %v333 = vmax.f32 %v331, %v332
      %v334 = vrot.slane %v333, 2
      %v335 = vmax.f32 %v333, %v334
      %v336 = vrot.slane %v335, 1
      %v337 = vmax.f32 %v335, %v336
      %v338 = vsel %vm225, %v185, -inf
      %v339 = vrot.slane %v338, 4
      %v340 = vmax.f32 %v338, %v339
      %v341 = vrot.slane %v340, 2
      %v342 = vmax.f32 %v340, %v341
      %v343 = vrot.slane %v342, 1
      %v344 = vmax.f32 %v342, %v343
      %v345 = vsel %vm225, %v209, -inf
      %v346 = vrot.slane %v345, 4
      %v347 = vmax.f32 %v345, %v346
      %v348 = vrot.slane %v347, 2
      %v349 = vmax.f32 %v347, %v348
      %v350 = vrot.slane %v349, 1
      %v351 = vmax.f32 %v349, %v350
      %v352 = vsel %vm225, %v186, -inf
      %v353 = vrot.slane %v352, 4
      %v354 = vmax.f32 %v352, %v353
      %v355 = vrot.slane %v354, 2
      %v356 = vmax.f32 %v354, %v355
      %v357 = vrot.slane %v356, 1
      %v358 = vmax.f32 %v356, %v357
      %v359 = vsel %vm225, %v210, -inf
      %v360 = vrot.slane %v359, 4
      %v361 = vmax.f32 %v359, %v360
      %v362 = vrot.slane %v361, 2
      %v363 = vmax.f32 %v361, %v362
      %v364 = vrot.slane %v363, 1
      %v365 = vmax.f32 %v363, %v364
      %v366 = vsel %vm225, %v187, -inf
      %v367 = vrot.slane %v366, 4
      %v368 = vmax.f32 %v366, %v367
      %v369 = vrot.slane %v368, 2
      %v370 = vmax.f32 %v368, %v369
      %v371 = vrot.slane %v370, 1
      %v372 = vmax.f32 %v370, %v371
      %v373 = vsel %vm225, %v211, -inf
      %v374 = vrot.slane %v373, 4
      %v375 = vmax.f32 %v373, %v374
      %v376 = vrot.slane %v375, 2
      %v377 = vmax.f32 %v375, %v376
      %v378 = vrot.slane %v377, 1
      %v379 = vmax.f32 %v377, %v378
      %v380 = vsel %vm225, %v188, -inf
      %v381 = vrot.slane %v380, 4
      %v382 = vmax.f32 %v380, %v381
      %v383 = vrot.slane %v382, 2
      %v384 = vmax.f32 %v382, %v383
      %v385 = vrot.slane %v384, 1
      %v386 = vmax.f32 %v384, %v385
      %v387 = vsel %vm225, %v212, -inf
      %v388 = vrot.slane %v387, 4
      %v389 = vmax.f32 %v387, %v388
      %v390 = vrot.slane %v389, 2
      %v391 = vmax.f32 %v389, %v390
      %v392 = vrot.slane %v391, 1
      %v393 = vmax.f32 %v391, %v392
      %v394 = vsel %vm225, %v177, inf
      %v395 = vrot.slane %v394, 4
      %v396 = vmin.f32 %v394, %v395
      %v397 = vrot.slane %v396, 2
      %v398 = vmin.f32 %v396, %v397
      %v399 = vrot.slane %v398, 1
      %v400 = vmin.f32 %v398, %v399
      %v401 = vsel %vm225, %v201, inf
      %v402 = vrot.slane %v401, 4
      %v403 = vmin.f32 %v401, %v402
      %v404 = vrot.slane %v403, 2
      %v405 = vmin.f32 %v403, %v404
      %v406 = vrot.slane %v405, 1
      %v407 = vmin.f32 %v405, %v406
      %v408 = vsel %vm225, %v178, inf
      %v409 = vrot.slane %v408, 4
      %v410 = vmin.f32 %v408, %v409
      %v411 = vrot.slane %v410, 2
      %v412 = vmin.f32 %v410, %v411
      %v413 = vrot.slane %v412, 1
      %v414 = vmin.f32 %v412, %v413
      %v415 = vsel %vm225, %v202, inf
      %v416 = vrot.slane %v415, 4
      %v417 = vmin.f32 %v415, %v416
      %v418 = vrot.slane %v417, 2
      %v419 = vmin.f32 %v417, %v418
      %v420 = vrot.slane %v419, 1
      %v421 = vmin.f32 %v419, %v420
      %v422 = vsel %vm225, %v179, inf
      %v423 = vrot.slane %v422, 4
      %v424 = vmin.f32 %v422, %v423
      %v425 = vrot.slane %v424, 2
      %v426 = vmin.f32 %v424, %v425
      %v427 = vrot.slane %v426, 1
      %v428 = vmin.f32 %v426, %v427
      %v429 = vsel %vm225, %v203, inf
      %v430 = vrot.slane %v429, 4
      %v431 = vmin.f32 %v429, %v430
      %v432 = vrot.slane %v431, 2
      %v433 = vmin.f32 %v431, %v432
      %v434 = vrot.slane %v433, 1
      %v435 = vmin.f32 %v433, %v434
      %v436 = vsel %vm225, %v180, inf
      %v437 = vrot.slane %v436, 4
      %v438 = vmin.f32 %v436, %v437
      %v439 = vrot.slane %v438, 2
      %v440 = vmin.f32 %v438, %v439
      %v441 = vrot.slane %v440, 1
      %v442 = vmin.f32 %v440, %v441
      %v443 = vsel %vm225, %v204, inf
      %v444 = vrot.slane %v443, 4
      %v445 = vmin.f32 %v443, %v444
      %v446 = vrot.slane %v445, 2
      %v447 = vmin.f32 %v445, %v446
      %v448 = vrot.slane %v447, 1
      %v449 = vmin.f32 %v447, %v448
      %v450 = vsel %vm225, %v181, inf
      %v451 = vrot.slane %v450, 4
      %v452 = vmin.f32 %v450, %v451
      %v453 = vrot.slane %v452, 2
      %v454 = vmin.f32 %v452, %v453
      %v455 = vrot.slane %v454, 1
      %v456 = vmin.f32 %v454, %v455
      %v457 = vsel %vm225, %v205, inf
      %v458 = vrot.slane %v457, 4
      %v459 = vmin.f32 %v457, %v458
      %v460 = vrot.slane %v459, 2
      %v461 = vmin.f32 %v459, %v460
      %v462 = vrot.slane %v461, 1
      %v463 = vmin.f32 %v461, %v462
      %v464 = vsel %vm225, %v182, inf
      %v465 = vrot.slane %v464, 4
      %v466 = vmin.f32 %v464, %v465
      %v467 = vrot.slane %v466, 2
      %v468 = vmin.f32 %v466, %v467
      %v469 = vrot.slane %v468, 1
      %v470 = vmin.f32 %v468, %v469
      %v471 = vsel %vm225, %v206, inf
      %v472 = vrot.slane %v471, 4
      %v473 = vmin.f32 %v471, %v472
      %v474 = vrot.slane %v473, 2
      %v475 = vmin.f32 %v473, %v474
      %v476 = vrot.slane %v475, 1
      %v477 = vmin.f32 %v475, %v476
      %v478 = vsel %vm225, %v183, inf
      %v479 = vrot.slane %v478, 4
      %v480 = vmin.f32 %v478, %v479
      %v481 = vrot.slane %v480, 2
      %v482 = vmin.f32 %v480, %v481
      %v483 = vrot.slane %v482, 1
      %v484 = vmin.f32 %v482, %v483
      %v485 = vsel %vm225, %v207, inf
      %v486 = vrot.slane %v485, 4
      %v487 = vmin.f32 %v485, %v486
      %v488 = vrot.slane %v487, 2
      %v489 = vmin.f32 %v487, %v488
      %v490 = vrot.slane %v489, 1
      %v491 = vmin.f32 %v489, %v490
      %v492 = vsel %vm225, %v184, inf
      %v493 = vrot.slane %v492, 4
      %v494 = vmin.f32 %v492, %v493
      %v495 = vrot.slane %v494, 2
      %v496 = vmin.f32 %v494, %v495
      %v497 = vrot.slane %v496, 1
      %v498 = vmin.f32 %v496, %v497
      %v499 = vsel %vm225, %v208, inf
      %v500 = vrot.slane %v499, 4
      %v501 = vmin.f32 %v499, %v500
      %v502 = vrot.slane %v501, 2
      %v503 = vmin.f32 %v501, %v502
      %v504 = vrot.slane %v503, 1
      %v505 = vmin.f32 %v503, %v504
      %v506 = vsel %vm225, %v185, inf
      %v507 = vrot.slane %v506, 4
      %v508 = vmin.f32 %v506, %v507
      %v509 = vrot.slane %v508, 2
      %v510 = vmin.f32 %v508, %v509
      %v511 = vrot.slane %v510, 1
      %v512 = vmin.f32 %v510, %v511
      %v513 = vsel %vm225, %v209, inf
      %v514 = vrot.slane %v513, 4
      %v515 = vmin.f32 %v513, %v514
      %v516 = vrot.slane %v515, 2
      %v517 = vmin.f32 %v515, %v516
      %v518 = vrot.slane %v517, 1
      %v519 = vmin.f32 %v517, %v518
      %v520 = vsel %vm225, %v186, inf
      %v521 = vrot.slane %v520, 4
      %v522 = vmin.f32 %v520, %v521
      %v523 = vrot.slane %v522, 2
      %v524 = vmin.f32 %v522, %v523
      %v525 = vrot.slane %v524, 1
      %v526 = vmin.f32 %v524, %v525
      %v527 = vsel %vm225, %v210, inf
      %v528 = vrot.slane %v527, 4
      %v529 = vmin.f32 %v527, %v528
      %v530 = vrot.slane %v529, 2
      %v531 = vmin.f32 %v529, %v530
      %v532 = vrot.slane %v531, 1
      %v533 = vmin.f32 %v531, %v532
      %v534 = vsel %vm225, %v187, inf
      %v535 = vrot.slane %v534, 4
      %v536 = vmin.f32 %v534, %v535
      %v537 = vrot.slane %v536, 2
      %v538 = vmin.f32 %v536, %v537
      %v539 = vrot.slane %v538, 1
      %v540 = vmin.f32 %v538, %v539
      %v541 = vsel %vm225, %v211, inf
      %v542 = vrot.slane %v541, 4
      %v543 = vmin.f32 %v541, %v542
      %v544 = vrot.slane %v543, 2
      %v545 = vmin.f32 %v543, %v544
      %v546 = vrot.slane %v545, 1
      %v547 = vmin.f32 %v545, %v546
      %v548 = vsel %vm225, %v188, inf
      %v549 = vrot.slane %v548, 4
      %v550 = vmin.f32 %v548, %v549
      %v551 = vrot.slane %v550, 2
      %v552 = vmin.f32 %v550, %v551
      %v553 = vrot.slane %v552, 1
      %v554 = vmin.f32 %v552, %v553
      %v555 = vsel %vm225, %v212, inf
      %v556 = vrot.slane %v555, 4
      %v557 = vmin.f32 %v555, %v556
      %v558 = vrot.slane %v557, 2
      %v559 = vmin.f32 %v557, %v558
      %v560 = vrot.slane %v559, 1
      %v561 = vmin.f32 %v559, %v560
      %v562 = vld [vmem:[%s0] sm:$0x7]
      %v563 = vld [vmem:[%s1] sm:$0x7]
      %vm564 = vcmp.ge.f32.partialorder %v562, 0.0
      %566 = vset.pattern.permute.xlu0 0
      %567 = vperm.xlu0 %566, %v562
      %v568 = vpop.permute.xlu0 %567
      %v570 = vmul.f32 %v568, %v232
      %v571 = vmul.f32 %v568, %v239
      %v572 = vmul.f32 %v568, %v246
      %v573 = vmul.f32 %v568, %v253
      %v574 = vmul.f32 %v568, %v260
      %v575 = vmul.f32 %v568, %v267
      %v576 = vmul.f32 %v568, %v274
      %v577 = vmul.f32 %v568, %v281
      %v578 = vmul.f32 %v568, %v288
      %v579 = vmul.f32 %v568, %v295
      %v580 = vmul.f32 %v568, %v302
      %v581 = vmul.f32 %v568, %v309
      %v582 = vmul.f32 %v568, %v316
      %v583 = vmul.f32 %v568, %v323
      %v584 = vmul.f32 %v568, %v330
      %v585 = vmul.f32 %v568, %v337
      %v586 = vmul.f32 %v568, %v344
      %v587 = vmul.f32 %v568, %v351
      %v588 = vmul.f32 %v568, %v358
      %v589 = vmul.f32 %v568, %v365
      %v590 = vmul.f32 %v568, %v372
      %v591 = vmul.f32 %v568, %v379
      %v592 = vmul.f32 %v568, %v386
      %v593 = vmul.f32 %v568, %v393
      %v594 = vmul.f32 %v568, %v400
      %v595 = vmul.f32 %v568, %v407
      %v596 = vmul.f32 %v568, %v414
      %v597 = vmul.f32 %v568, %v421
      %v598 = vmul.f32 %v568, %v428
      %v599 = vmul.f32 %v568, %v435
      %v600 = vmul.f32 %v568, %v442
      %v601 = vmul.f32 %v568, %v449
      %v602 = vmul.f32 %v568, %v456
      %v603 = vmul.f32 %v568, %v463
      %v604 = vmul.f32 %v568, %v470
      %v605 = vmul.f32 %v568, %v477
      %v606 = vmul.f32 %v568, %v484
      %v607 = vmul.f32 %v568, %v491
      %v608 = vmul.f32 %v568, %v498
      %v609 = vmul.f32 %v568, %v505
      %v610 = vmul.f32 %v568, %v512
      %v611 = vmul.f32 %v568, %v519
      %v612 = vmul.f32 %v568, %v526
      %v613 = vmul.f32 %v568, %v533
      %v614 = vmul.f32 %v568, %v540
      %v615 = vmul.f32 %v568, %v547
      %v616 = vmul.f32 %v568, %v554
      %v617 = vmul.f32 %v568, %v561
      %v618 = vsel %vm564, 1, 0
      %619 = vset.pattern.permute.xlu0 0
      %620 = vperm.xlu0 %619, %v618
      %v621 = vpop.permute.xlu0 %620
      %vm622 = vcmp.eq.s32.totalorder %v621, 1
      %v623 = vsel %vm622, %v570, %v594
      %v624 = vsel %vm622, %v571, %v595
      %v625 = vsel %vm622, %v572, %v596
      %v626 = vsel %vm622, %v573, %v597
      %v627 = vsel %vm622, %v574, %v598
      %v628 = vsel %vm622, %v575, %v599
      %v629 = vsel %vm622, %v576, %v600
      %v630 = vsel %vm622, %v577, %v601
      %v631 = vsel %vm622, %v578, %v602
      %v632 = vsel %vm622, %v579, %v603
      %v633 = vsel %vm622, %v580, %v604
      %v634 = vsel %vm622, %v581, %v605
      %v635 = vsel %vm622, %v582, %v606
      %v636 = vsel %vm622, %v583, %v607
      %v637 = vsel %vm622, %v584, %v608
      %v638 = vsel %vm622, %v585, %v609
      %v639 = vsel %vm622, %v586, %v610
      %v640 = vsel %vm622, %v587, %v611
      %v641 = vsel %vm622, %v588, %v612
      %v642 = vsel %vm622, %v589, %v613
      %v643 = vsel %vm622, %v590, %v614
      %v644 = vsel %vm622, %v591, %v615
      %v645 = vsel %vm622, %v592, %v616
      %v646 = vsel %vm622, %v593, %v617
      %648 = vset.pattern.permute.xlu0 0
      %649 = vperm.xlu0 %648, %v563
      %v650 = vpop.permute.xlu0 %649
      %v652 = vadd.f32 %v623, %v650
      %v653 = vadd.f32 %v624, %v650
      %v654 = vadd.f32 %v625, %v650
      %v655 = vadd.f32 %v626, %v650
      %v656 = vadd.f32 %v627, %v650
      %v657 = vadd.f32 %v628, %v650
      %v658 = vadd.f32 %v629, %v650
      %v659 = vadd.f32 %v630, %v650
      %v660 = vadd.f32 %v631, %v650
      %v661 = vadd.f32 %v632, %v650
      %v662 = vadd.f32 %v633, %v650
      %v663 = vadd.f32 %v634, %v650
      %v664 = vadd.f32 %v635, %v650
      %v665 = vadd.f32 %v636, %v650
      %v666 = vadd.f32 %v637, %v650
      %v667 = vadd.f32 %v638, %v650
      %v668 = vadd.f32 %v639, %v650
      %v669 = vadd.f32 %v640, %v650
      %v670 = vadd.f32 %v641, %v650
      %v671 = vadd.f32 %v642, %v650
      %v672 = vadd.f32 %v643, %v650
      %v673 = vadd.f32 %v644, %v650
      %v674 = vadd.f32 %v645, %v650
      %v675 = vadd.f32 %v646, %v650
      %v676 = vmax.f32 %v652, 0.0
      %v677 = vmax.f32 %v653, 0.0
      %v678 = vmax.f32 %v654, 0.0
      %v679 = vmax.f32 %v655, 0.0
      %v680 = vmax.f32 %v656, 0.0
      %v681 = vmax.f32 %v657, 0.0
      %v682 = vmax.f32 %v658, 0.0
      %v683 = vmax.f32 %v659, 0.0
      %v684 = vmax.f32 %v660, 0.0
      %v685 = vmax.f32 %v661, 0.0
      %v686 = vmax.f32 %v662, 0.0
      %v687 = vmax.f32 %v663, 0.0
      %v688 = vmax.f32 %v664, 0.0
      %v689 = vmax.f32 %v665, 0.0
      %v690 = vmax.f32 %v666, 0.0
      %v691 = vmax.f32 %v667, 0.0
      %v692 = vmax.f32 %v668, 0.0
      %v693 = vmax.f32 %v669, 0.0
      %v694 = vmax.f32 %v670, 0.0
      %v695 = vmax.f32 %v671, 0.0
      %v696 = vmax.f32 %v672, 0.0
      %v697 = vmax.f32 %v673, 0.0
      %v698 = vmax.f32 %v674, 0.0
      %v699 = vmax.f32 %v675, 0.0
      %v700 = vpack.c.bf16 %v676, %v676
      %v701 = vpack.c.bf16 %v677, %v677
      %v702 = vpack.c.bf16 %v678, %v678
      %v703 = vpack.c.bf16 %v679, %v679
      %v704 = vpack.c.bf16 %v680, %v680
      %v705 = vpack.c.bf16 %v681, %v681
      %v706 = vpack.c.bf16 %v682, %v682
      %v707 = vpack.c.bf16 %v683, %v683
      %v708 = vpack.c.bf16 %v684, %v684
      %v709 = vpack.c.bf16 %v685, %v685
      %v710 = vpack.c.bf16 %v686, %v686
      %v711 = vpack.c.bf16 %v687, %v687
      %v712 = vpack.c.bf16 %v688, %v688
      %v713 = vpack.c.bf16 %v689, %v689
      %v714 = vpack.c.bf16 %v690, %v690
      %v715 = vpack.c.bf16 %v691, %v691
      %v716 = vpack.c.bf16 %v692, %v692
      %v717 = vpack.c.bf16 %v693, %v693
      %v718 = vpack.c.bf16 %v694, %v694
      %v719 = vpack.c.bf16 %v695, %v695
      %v720 = vpack.c.bf16 %v696, %v696
      %v721 = vpack.c.bf16 %v697, %v697
      %v722 = vpack.c.bf16 %v698, %v698
      %v723 = vpack.c.bf16 %v699, %v699
      %v748 = vcombine.low %v700, %v701
      %v749 = vcombine.low %v702, %v703
      %v751 = vunpack.c.l.s4 1983009808
      %v752 = vunpack.c.0.s8 %v751
      %v753 = vlaneseq
      %v754 = vshrl.u32 %v753, 7
      %v755 = vsub.s32 %v752, %v754
      %v756 = vrot.slane %v748, %v755
      %v758 = vunpack.c.l.s4 1983009808
      %v759 = vunpack.c.0.s8 %v758
      %v760 = vlaneseq
      %v761 = vshrl.u32 %v760, 7
      %v762 = vsub.s32 %v759, %v761
      %v763 = vrot.slane %v749, %v762
      %v764 = vcombine.low %v756, %v763
      %v765 = vcombine.low %v704, %v705
      %v766 = vcombine.low %v706, %v707
      %v768 = vunpack.c.l.s4 1983009808
      %v769 = vunpack.c.0.s8 %v768
      %v770 = vlaneseq
      %v771 = vshrl.u32 %v770, 7
      %v772 = vsub.s32 %v769, %v771
      %v773 = vrot.slane %v765, %v772
      %v775 = vunpack.c.l.s4 1983009808
      %v776 = vunpack.c.0.s8 %v775
      %v777 = vlaneseq
      %v778 = vshrl.u32 %v777, 7
      %v779 = vsub.s32 %v776, %v778
      %v780 = vrot.slane %v766, %v779
      %v781 = vcombine.low %v773, %v780
      %v782 = vcombine.low %v708, %v709
      %v783 = vcombine.low %v710, %v711
      %v785 = vunpack.c.l.s4 1983009808
      %v786 = vunpack.c.0.s8 %v785
      %v787 = vlaneseq
      %v788 = vshrl.u32 %v787, 7
      %v789 = vsub.s32 %v786, %v788
      %v790 = vrot.slane %v782, %v789
      %v792 = vunpack.c.l.s4 1983009808
      %v793 = vunpack.c.0.s8 %v792
      %v794 = vlaneseq
      %v795 = vshrl.u32 %v794, 7
      %v796 = vsub.s32 %v793, %v795
      %v797 = vrot.slane %v783, %v796
      %v798 = vcombine.low %v790, %v797
      %v799 = vcombine.low %v712, %v713
      %v800 = vcombine.low %v714, %v715
      %v802 = vunpack.c.l.s4 1983009808
      %v803 = vunpack.c.0.s8 %v802
      %v804 = vlaneseq
      %v805 = vshrl.u32 %v804, 7
      %v806 = vsub.s32 %v803, %v805
      %v807 = vrot.slane %v799, %v806
      %v809 = vunpack.c.l.s4 1983009808
      %v810 = vunpack.c.0.s8 %v809
      %v811 = vlaneseq
      %v812 = vshrl.u32 %v811, 7
      %v813 = vsub.s32 %v810, %v812
      %v814 = vrot.slane %v800, %v813
      %v815 = vcombine.low %v807, %v814
      %v816 = vcombine.low %v716, %v717
      %v817 = vcombine.low %v718, %v719
      %v819 = vunpack.c.l.s4 1983009808
      %v820 = vunpack.c.0.s8 %v819
      %v821 = vlaneseq
      %v822 = vshrl.u32 %v821, 7
      %v823 = vsub.s32 %v820, %v822
      %v824 = vrot.slane %v816, %v823
      %v826 = vunpack.c.l.s4 1983009808
      %v827 = vunpack.c.0.s8 %v826
      %v828 = vlaneseq
      %v829 = vshrl.u32 %v828, 7
      %v830 = vsub.s32 %v827, %v829
      %v831 = vrot.slane %v817, %v830
      %v832 = vcombine.low %v824, %v831
      %v833 = vcombine.low %v720, %v721
      %v834 = vcombine.low %v722, %v723
      %v836 = vunpack.c.l.s4 1983009808
      %v837 = vunpack.c.0.s8 %v836
      %v838 = vlaneseq
      %v839 = vshrl.u32 %v838, 7
      %v840 = vsub.s32 %v837, %v839
      %v841 = vrot.slane %v833, %v840
      %v843 = vunpack.c.l.s4 1983009808
      %v844 = vunpack.c.0.s8 %v843
      %v845 = vlaneseq
      %v846 = vshrl.u32 %v845, 7
      %v847 = vsub.s32 %v844, %v846
      %v848 = vrot.slane %v834, %v847
      %v849 = vcombine.low %v841, %v848
      %vm856 = vcmask 1041408
      %vm857 = vsmask.f32 1280
      %vm858 = vmand %vm856, %vm857
      %vm859 = vcmask 1043458
      %vm860 = vsmask.f32 3328
      %vm861 = vmand %vm859, %vm860
      %vm862 = vmor %vm861, %vm858
      %vm863 = vcmask 1045508
      %vm864 = vsmask.f32 5376
      %vm865 = vmand %vm863, %vm864
      %vm866 = vmor %vm865, %vm862
      %vm867 = vcmask 1047558
      %vm868 = vsmask.f32 7424
      %vm869 = vmand %vm867, %vm868
      %vm870 = vmor %vm869, %vm866
      %v871 = vld [vmem:[%s170] sm:$0xff]
      %v872 = vsel %vm870, %v764, %v871
      %873 = vst [vmem:[%s170] sm:$0xff] %v872
      %v874 = vld [vmem:[%s170 + $0x8] sm:$0xff]
      %v875 = vsel %vm870, %v781, %v874
      %876 = vst [vmem:[%s170 + $0x8] sm:$0xff] %v875
      %v877 = vld [vmem:[%s170 + $0x10] sm:$0xff]
      %v878 = vsel %vm870, %v798, %v877
      %879 = vst [vmem:[%s170 + $0x10] sm:$0xff] %v878
      %v880 = vld [vmem:[%s170 + $0x18] sm:$0xff]
      %v881 = vsel %vm870, %v815, %v880
      %882 = vst [vmem:[%s170 + $0x18] sm:$0xff] %v881
      %v883 = vld [vmem:[%s170 + $0x20] sm:$0xff]
      %v884 = vsel %vm870, %v832, %v883
      %885 = vst [vmem:[%s170 + $0x20] sm:$0xff] %v884
      %v886 = vld [vmem:[%s170 + $0x28] sm:$0xff]
      %v887 = vsel %vm870, %v849, %v886
      %888 = vst [vmem:[%s170 + $0x28] sm:$0xff] %v887
      %p889 = scmp.lt.s32.totalorder %s14, 1
      %s890 = scalar_select %p889, %s14, 1
      %s891 = smul.addr %s890, 24
      %s892 = smul.addr %s891, 2
      %s893 = scalar_lea.vmem %s3, %s892
      // Predicated region
      $region33: #{cnn_forward.3} parent=31 // pred_check
        %p894 = pneg %p100
      $region34: #{cnn_forward.3} parent=31 // pred_check_branch
        %896 = sbr.rel (%p894) target = $region36
      $region35: #{cnn_forward.3} parent=31 // pred_region
        _
      $region36: #{cnn_forward.3} parent=31 // pred_fallthru
        _
    $region32: #{cnn_forward.3} parent=5 // pred_fallthru
      _
    %p897 = scmp.le.s32.totalorder 2, %s9
    // Predicated region
    $region37: #{cnn_forward.3} parent=5 // pred_check
      %p898 = pneg %p897
    $region38: #{cnn_forward.3} parent=5 // pred_check_branch
      %900 = sbr.rel (%p898) target = $region40
    $region39: #{cnn_forward.3} parent=5 // pred_region
      %s901 = ssub.s32 %s9, 2
      // Predicated region
      $region41: #{cnn_forward.3} parent=39 // pred_check
        %p902 = pneg %p106
      $region42: #{cnn_forward.3} parent=39 // pred_check_branch
        %904 = sbr.rel (%p902) target = $region44
      $region43: #{cnn_forward.3} parent=39 // pred_region
        %p905 = scmp.lt.s32.totalorder %s15, 1
        %s906 = scalar_select %p905, %s15, 1
        %s907 = smul.addr %s906, 24
        %s908 = smul.addr %s907, 2
        %s909 = scalar_lea.vmem %s3, %s908
      $region44: #{cnn_forward.3} parent=39 // pred_fallthru
        _
    $region40: #{cnn_forward.3} parent=5 // pred_fallthru
      _
  $region6: #{cnn_forward.3} parent=0 // loop_footer
    %s13 = sadd.s32 1, %s9
  $region7: #{cnn_forward.3} parent=0 // loop_footer_branch
    %8 = sbr.rel target = $region3
  $region8: #{cnn_forward.3} parent=0 // loop_exit
    _

// kernel: cnn_forward.4
$region0: #{cnn_forward.4}
  #allocation0 [shape = 'u32[]', space=smem, size = 0x4, offset = 0x4, fixed_abs, tag = 'smem constant byte address 0x4 - core index']
  #allocation1 [shape = 'u32[144,128]{1,0:T(1,128)}', space=vmem, size = 0x12000, scoped, tag = 'internal scratch']
  %s0 = inlined_call_operand.vmem [shape: bf16[6,12], index: 0, kind: input, shape index: {}]
  %s1 = inlined_call_operand.vmem [shape: f32[6,1], index: 1, kind: input, shape index: {}]
  %s2 = inlined_call_operand.vmem [shape: bf16[12,1536], index: 2, kind: input, shape index: {}]
  %s3 = inlined_call_operand.vmem [shape: f32[6,384], index: 3, kind: output, shape index: {}]
  %s4 = sld [smem:[#allocation0]]
  $region22: #{cnn_forward.4} parent=0
    _
  %s6 = ssub.s32 1, %s4
  %s7 = scalar_select 0, %s6, %s4
  // Predicated region
  $region2: #{cnn_forward.4} parent=0 // pred_check
    _
  $region3: #{cnn_forward.4} parent=0 // pred_check_branch
    %9 = sbr.rel (0) target = $region5
  $region4: #{cnn_forward.4} parent=0 // pred_region
    _
  $region5: #{cnn_forward.4} parent=0 // pred_fallthru
    _
  // Predicated region
  $region6: #{cnn_forward.4} parent=0 // pred_check
    _
  $region7: #{cnn_forward.4} parent=0 // pred_check_branch
    %11 = sbr.rel (0) target = $region9
  $region8: #{cnn_forward.4} parent=0 // pred_region
    _
  $region9: #{cnn_forward.4} parent=0 // pred_fallthru
    _
  // Predicated region
  $region10: #{cnn_forward.4} parent=0 // pred_check
    _
  $region11: #{cnn_forward.4} parent=0 // pred_check_branch
    %13 = sbr.rel (0) target = $region13
  $region12: #{cnn_forward.4} parent=0 // pred_region
    _
  $region13: #{cnn_forward.4} parent=0 // pred_fallthru
    _
  %v15 = vld [vmem:[%s0] sm:$0x7]
  %v16 = vld [vmem:[%s2] sm:$0xff]
  %v17 = vld [vmem:[%s2 + $0x8] sm:$0xff]
  %v18 = vld [vmem:[%s2 + $0x10] sm:$0xff]
  %v19 = vld [vmem:[%s2 + $0x18] sm:$0xff]
  %v20 = vld [vmem:[%s2 + $0x20] sm:$0xff]
  %v21 = vld [vmem:[%s2 + $0x28] sm:$0xff]
  %v22 = vld [vmem:[%s2 + $0x30] sm:$0x33]
  %v23 = vld [vmem:[%s2 + $0x38] sm:$0x33]
  %v24 = vld [vmem:[%s2 + $0x40] sm:$0x33]
  %v25 = vld [vmem:[%s2 + $0x48] sm:$0x33]
  %v26 = vld [vmem:[%s2 + $0x50] sm:$0x33]
  %v27 = vld [vmem:[%s2 + $0x58] sm:$0x33]
  %v40 = vunpack.c.l.b16 %v16
  %v41 = vunpack.c.h.b16 %v16
  %v42 = vunpack.c.l.b16 %v17
  %v43 = vunpack.c.h.b16 %v17
  %v44 = vunpack.c.l.b16 %v18
  %v45 = vunpack.c.h.b16 %v18
  %v46 = vunpack.c.l.b16 %v19
  %v47 = vunpack.c.h.b16 %v19
  %v48 = vunpack.c.l.b16 %v20
  %v49 = vunpack.c.h.b16 %v20
  %v50 = vunpack.c.l.b16 %v21
  %v51 = vunpack.c.h.b16 %v21
  %v52 = vunpack.c.l.b16 %v22
  %v53 = vunpack.c.h.b16 %v22
  %v54 = vunpack.c.l.b16 %v23
  %v55 = vunpack.c.h.b16 %v23
  %v56 = vunpack.c.l.b16 %v24
  %v57 = vunpack.c.h.b16 %v24
  %v58 = vunpack.c.l.b16 %v25
  %v59 = vunpack.c.h.b16 %v25
  %v60 = vunpack.c.l.b16 %v26
  %v61 = vunpack.c.h.b16 %v26
  %v62 = vunpack.c.l.b16 %v27
  %v63 = vunpack.c.h.b16 %v27
  %v64 = vpack.c.b16 %v52, %v40
  %v65 = vpack.c.b16 %v53, %v41
  %v66 = vpack.c.b16 %v54, %v42
  %v67 = vpack.c.b16 %v55, %v43
  %v68 = vpack.c.b16 %v56, %v44
  %v69 = vpack.c.b16 %v57, %v45
  %v70 = vpack.c.b16 %v58, %v46
  %v71 = vpack.c.b16 %v59, %v47
  %v72 = vpack.c.b16 %v60, %v48
  %v73 = vpack.c.b16 %v61, %v49
  %v74 = vpack.c.b16 %v62, %v50
  %v75 = vpack.c.b16 %v63, %v51
  %vm76 = vcmask 97280
  %v78 = vsel %vm76, %v15, 0
  %vm80 = vcmask 1045504
  %v82 = vsel %vm80, %v64, 0
  %v85 = vsel %vm80, %v65, 0
  %v88 = vsel %vm80, %v66, 0
  %v91 = vsel %vm80, %v67, 0
  %v94 = vsel %vm80, %v68, 0
  %v97 = vsel %vm80, %v69, 0
  %v100 = vsel %vm80, %v70, 0
  %v103 = vsel %vm80, %v71, 0
  %v106 = vsel %vm80, %v72, 0
  %v109 = vsel %vm80, %v73, 0
  %v112 = vsel %vm80, %v74, 0
  %v115 = vsel %vm80, %v75, 0
  %117 = vmatprep.subr.bf16.mxu0 %v85
  %118 = vmatpush1.bf16.msra.mxu0 %v82
  %119 = vmatprep.subr.bf16.mxu0 0
  %120 = vmatpush1.bf16.msra.mxu0 0
  %121 = vmatprep.subr.bf16.mxu0 0
  %122 = vmatpush1.bf16.msra.mxu0 0
  %123 = vmatprep.subr.bf16.mxu0 0
  %124 = vmatpush1.bf16.msra.mxu0 0
  %125 = vmatprep.subr.bf16.mxu0 0
  %126 = vmatpush1.bf16.msra.mxu0 0
  %127 = vmatprep.subr.bf16.mxu0 0
  %128 = vmatpush1.bf16.msra.mxu0 0
  %129 = vmatprep.subr.bf16.mxu0 0
  %130 = vmatpush1.bf16.msra.mxu0 0
  %131 = vmatprep.subr.bf16.mxu0 0
  %132 = vmatpush1.bf16.msra.mxu0 0
  %133 = vmatprep.subr.bf16.mxu0 0
  %134 = vmatpush1.bf16.msra.mxu0 0
  %135 = vmatprep.subr.bf16.mxu0 0
  %136 = vmatpush1.bf16.msra.mxu0 0
  %137 = vmatprep.subr.bf16.mxu0 0
  %138 = vmatpush1.bf16.msra.mxu0 0
  %139 = vmatprep.subr.bf16.mxu0 0
  %140 = vmatpush1.bf16.msra.mxu0 0
  %141 = vmatprep.subr.bf16.mxu0 0
  %142 = vmatpush1.bf16.msra.mxu0 0
  %143 = vmatprep.subr.bf16.mxu0 0
  %144 = vmatpush1.bf16.msra.mxu0 0
  %145 = vmatprep.subr.bf16.mxu0 0
  %146 = vmatpush1.bf16.msra.mxu0 0
  %147 = vmatprep.subr.bf16.mxu0 0
  %148 = vmatpush1.bf16.msra.mxu0 0
  %149 = vmatprep.mubr.bf16.mxu0 0
  %150 = vmatmul.mubr.bf16.gmra.mrb[0].mxu0 %v78
  %v151 = vpop.f32.mrb[0].mxu0
  %v152 = vadd.f32 0.0, %v151
  %v153 = vpop.f32.mrb[0].mxu0
  %v154 = vadd.f32 0.0, %v153
  %v155 = vpop.f32.mrb[0].mxu0
  %v156 = vpop.f32.mrb[0].mxu0
  %157 = vdwg.mxu0
  %158 = vmatprep.subr.bf16.mxu0 %v91
  %159 = vmatpush1.bf16.msra.mxu0 %v88
  %160 = vmatprep.subr.bf16.mxu0 0
  %161 = vmatpush1.bf16.msra.mxu0 0
  %162 = vmatprep.subr.bf16.mxu0 0
  %163 = vmatpush1.bf16.msra.mxu0 0
  %164 = vmatprep.subr.bf16.mxu0 0
  %165 = vmatpush1.bf16.msra.mxu0 0
  %166 = vmatprep.subr.bf16.mxu0 0
  %167 = vmatpush1.bf16.msra.mxu0 0
  %168 = vmatprep.subr.bf16.mxu0 0
  %169 = vmatpush1.bf16.msra.mxu0 0
  %170 = vmatprep.subr.bf16.mxu0 0
  %171 = vmatpush1.bf16.msra.mxu0 0
  %172 = vmatprep.subr.bf16.mxu0 0
  %173 = vmatpush1.bf16.msra.mxu0 0
  %174 = vmatprep.subr.bf16.mxu0 0
  %175 = vmatpush1.bf16.msra.mxu0 0
  %176 = vmatprep.subr.bf16.mxu0 0
  %177 = vmatpush1.bf16.msra.mxu0 0
  %178 = vmatprep.subr.bf16.mxu0 0
  %179 = vmatpush1.bf16.msra.mxu0 0
  %180 = vmatprep.subr.bf16.mxu0 0
  %181 = vmatpush1.bf16.msra.mxu0 0
  %182 = vmatprep.subr.bf16.mxu0 0
  %183 = vmatpush1.bf16.msra.mxu0 0
  %184 = vmatprep.subr.bf16.mxu0 0
  %185 = vmatpush1.bf16.msra.mxu0 0
  %186 = vmatprep.subr.bf16.mxu0 0
  %187 = vmatpush1.bf16.msra.mxu0 0
  %188 = vmatprep.subr.bf16.mxu0 0
  %189 = vmatpush1.bf16.msra.mxu0 0
  %190 = vmatprep.mubr.bf16.mxu0 0
  %191 = vmatmul.mubr.bf16.gmra.mrb[0].mxu0 %v78
  %v192 = vpop.f32.mrb[0].mxu0
  %v193 = vadd.f32 0.0, %v192
  %v194 = vpop.f32.mrb[0].mxu0
  %v195 = vadd.f32 0.0, %v194
  %v196 = vpop.f32.mrb[0].mxu0
  %v197 = vpop.f32.mrb[0].mxu0
  %198 = vdwg.mxu0
  %199 = vmatprep.subr.bf16.mxu0 %v97
  %200 = vmatpush1.bf16.msra.mxu0 %v94
  %201 = vmatprep.subr.bf16.mxu0 0
  %202 = vmatpush1.bf16.msra.mxu0 0
  %203 = vmatprep.subr.bf16.mxu0 0
  %204 = vmatpush1.bf16.msra.mxu0 0
  %205 = vmatprep.subr.bf16.mxu0 0
  %206 = vmatpush1.bf16.msra.mxu0 0
  %207 = vmatprep.subr.bf16.mxu0 0
  %208 = vmatpush1.bf16.msra.mxu0 0
  %209 = vmatprep.subr.bf16.mxu0 0
  %210 = vmatpush1.bf16.msra.mxu0 0
  %211 = vmatprep.subr.bf16.mxu0 0
  %212 = vmatpush1.bf16.msra.mxu0 0
  %213 = vmatprep.subr.bf16.mxu0 0
  %214 = vmatpush1.bf16.msra.mxu0 0
  %215 = vmatprep.subr.bf16.mxu0 0
  %216 = vmatpush1.bf16.msra.mxu0 0
  %217 = vmatprep.subr.bf16.mxu0 0
  %218 = vmatpush1.bf16.msra.mxu0 0
  %219 = vmatprep.subr.bf16.mxu0 0
  %220 = vmatpush1.bf16.msra.mxu0 0
  %221 = vmatprep.subr.bf16.mxu0 0
  %222 = vmatpush1.bf16.msra.mxu0 0
  %223 = vmatprep.subr.bf16.mxu0 0
  %224 = vmatpush1.bf16.msra.mxu0 0
  %225 = vmatprep.subr.bf16.mxu0 0
  %226 = vmatpush1.bf16.msra.mxu0 0
  %227 = vmatprep.subr.bf16.mxu0 0
  %228 = vmatpush1.bf16.msra.mxu0 0
  %229 = vmatprep.subr.bf16.mxu0 0
  %230 = vmatpush1.bf16.msra.mxu0 0
  %231 = vmatprep.mubr.bf16.mxu0 0
  %232 = vmatmul.mubr.bf16.gmra.mrb[0].mxu0 %v78
  %v233 = vpop.f32.mrb[0].mxu0
  %v234 = vadd.f32 0.0, %v233
  %v235 = vpop.f32.mrb[0].mxu0
  %v236 = vadd.f32 0.0, %v235
  %v237 = vpop.f32.mrb[0].mxu0
  %v238 = vpop.f32.mrb[0].mxu0
  %239 = vdwg.mxu0
  %240 = vmatprep.subr.bf16.mxu0 %v103
  %241 = vmatpush1.bf16.msra.mxu0 %v100
  %242 = vmatprep.subr.bf16.mxu0 0
  %243 = vmatpush1.bf16.msra.mxu0 0
  %244 = vmatprep.subr.bf16.mxu0 0
  %245 = vmatpush1.bf16.msra.mxu0 0
  %246 = vmatprep.subr.bf16.mxu0 0
  %247 = vmatpush1.bf16.msra.mxu0 0
  %248 = vmatprep.subr.bf16.mxu0 0
  %249 = vmatpush1.bf16.msra.mxu0 0
  %250 = vmatprep.subr.bf16.mxu0 0
  %251 = vmatpush1.bf16.msra.mxu0 0
  %252 = vmatprep.subr.bf16.mxu0 0
  %253 = vmatpush1.bf16.msra.mxu0 0
  %254 = vmatprep.subr.bf16.mxu0 0
  %255 = vmatpush1.bf16.msra.mxu0 0
  %256 = vmatprep.subr.bf16.mxu0 0
  %257 = vmatpush1.bf16.msra.mxu0 0
  %258 = vmatprep.subr.bf16.mxu0 0
  %259 = vmatpush1.bf16.msra.mxu0 0
  %260 = vmatprep.subr.bf16.mxu0 0
  %261 = vmatpush1.bf16.msra.mxu0 0
  %262 = vmatprep.subr.bf16.mxu0 0
  %263 = vmatpush1.bf16.msra.mxu0 0
  %264 = vmatprep.subr.bf16.mxu0 0
  %265 = vmatpush1.bf16.msra.mxu0 0
  %266 = vmatprep.subr.bf16.mxu0 0
  %267 = vmatpush1.bf16.msra.mxu0 0
  %268 = vmatprep.subr.bf16.mxu0 0
  %269 = vmatpush1.bf16.msra.mxu0 0
  %270 = vmatprep.subr.bf16.mxu0 0
  %271 = vmatpush1.bf16.msra.mxu0 0
  %272 = vmatprep.mubr.bf16.mxu0 0
  %273 = vmatmul.mubr.bf16.gmra.mrb[0].mxu0 %v78
  %v274 = vpop.f32.mrb[0].mxu0
  %v275 = vadd.f32 0.0, %v274
  %v276 = vpop.f32.mrb[0].mxu0
  %v277 = vadd.f32 0.0, %v276
  %v278 = vpop.f32.mrb[0].mxu0
  %v279 = vpop.f32.mrb[0].mxu0
  %280 = vdwg.mxu0
  %281 = vmatprep.subr.bf16.mxu0 %v109
  %282 = vmatpush1.bf16.msra.mxu0 %v106
  %283 = vmatprep.subr.bf16.mxu0 0
  %284 = vmatpush1.bf16.msra.mxu0 0
  %285 = vmatprep.subr.bf16.mxu0 0
  %286 = vmatpush1.bf16.msra.mxu0 0
  %287 = vmatprep.subr.bf16.mxu0 0
  %288 = vmatpush1.bf16.msra.mxu0 0
  %289 = vmatprep.subr.bf16.mxu0 0
  %290 = vmatpush1.bf16.msra.mxu0 0
  %291 = vmatprep.subr.bf16.mxu0 0
  %292 = vmatpush1.bf16.msra.mxu0 0
  %293 = vmatprep.subr.bf16.mxu0 0
  %294 = vmatpush1.bf16.msra.mxu0 0
  %295 = vmatprep.subr.bf16.mxu0 0
  %296 = vmatpush1.bf16.msra.mxu0 0
  %297 = vmatprep.subr.bf16.mxu0 0
  %298 = vmatpush1.bf16.msra.mxu0 0
  %299 = vmatprep.subr.bf16.mxu0 0
  %300 = vmatpush1.bf16.msra.mxu0 0
  %301 = vmatprep.subr.bf16.mxu0 0
  %302 = vmatpush1.bf16.msra.mxu0 0
  %303 = vmatprep.subr.bf16.mxu0 0
  %304 = vmatpush1.bf16.msra.mxu0 0
  %305 = vmatprep.subr.bf16.mxu0 0
  %306 = vmatpush1.bf16.msra.mxu0 0
  %307 = vmatprep.subr.bf16.mxu0 0
  %308 = vmatpush1.bf16.msra.mxu0 0
  %309 = vmatprep.subr.bf16.mxu0 0
  %310 = vmatpush1.bf16.msra.mxu0 0
  %311 = vmatprep.subr.bf16.mxu0 0
  %312 = vmatpush1.bf16.msra.mxu0 0
  %313 = vmatprep.mubr.bf16.mxu0 0
  %314 = vmatmul.mubr.bf16.gmra.mrb[0].mxu0 %v78
  %v315 = vpop.f32.mrb[0].mxu0
  %v316 = vadd.f32 0.0, %v315
  %v317 = vpop.f32.mrb[0].mxu0
  %v318 = vadd.f32 0.0, %v317
  %v319 = vpop.f32.mrb[0].mxu0
  %v320 = vpop.f32.mrb[0].mxu0
  %321 = vdwg.mxu0
  %322 = vmatprep.subr.bf16.mxu0 %v115
  %323 = vmatpush1.bf16.msra.mxu0 %v112
  %324 = vmatprep.subr.bf16.mxu0 0
  %325 = vmatpush1.bf16.msra.mxu0 0
  %326 = vmatprep.subr.bf16.mxu0 0
  %327 = vmatpush1.bf16.msra.mxu0 0
  %328 = vmatprep.subr.bf16.mxu0 0
  %329 = vmatpush1.bf16.msra.mxu0 0
  %330 = vmatprep.subr.bf16.mxu0 0
  %331 = vmatpush1.bf16.msra.mxu0 0
  %332 = vmatprep.subr.bf16.mxu0 0
  %333 = vmatpush1.bf16.msra.mxu0 0
  %334 = vmatprep.subr.bf16.mxu0 0
  %335 = vmatpush1.bf16.msra.mxu0 0
  %336 = vmatprep.subr.bf16.mxu0 0
  %337 = vmatpush1.bf16.msra.mxu0 0
  %338 = vmatprep.subr.bf16.mxu0 0
  %339 = vmatpush1.bf16.msra.mxu0 0
  %340 = vmatprep.subr.bf16.mxu0 0
  %341 = vmatpush1.bf16.msra.mxu0 0
  %342 = vmatprep.subr.bf16.mxu0 0
  %343 = vmatpush1.bf16.msra.mxu0 0
  %344 = vmatprep.subr.bf16.mxu0 0
  %345 = vmatpush1.bf16.msra.mxu0 0
  %346 = vmatprep.subr.bf16.mxu0 0
  %347 = vmatpush1.bf16.msra.mxu0 0
  %348 = vmatprep.subr.bf16.mxu0 0
  %349 = vmatpush1.bf16.msra.mxu0 0
  %350 = vmatprep.subr.bf16.mxu0 0
  %351 = vmatpush1.bf16.msra.mxu0 0
  %352 = vmatprep.subr.bf16.mxu0 0
  %353 = vmatpush1.bf16.msra.mxu0 0
  %354 = vmatprep.mubr.bf16.mxu0 0
  %355 = vmatmul.mubr.bf16.gmra.mrb[0].mxu0 %v78
  %v356 = vpop.f32.mrb[0].mxu0
  %v357 = vadd.f32 0.0, %v356
  %v358 = vpop.f32.mrb[0].mxu0
  %v359 = vadd.f32 0.0, %v358
  %v360 = vpop.f32.mrb[0].mxu0
  %v361 = vpop.f32.mrb[0].mxu0
  %362 = vdwg.mxu0
  %v363 = vmax.f32 %v152, %v195
  %v364 = vmax.f32 %v154, %v234
  %v365 = vmax.f32 %v193, %v236
  %v366 = vmax.f32 %v275, %v318
  %v367 = vmax.f32 %v277, %v357
  %v368 = vmax.f32 %v316, %v359
  %v369 = vmax.f32 %v363, %v366
  %v370 = vmax.f32 %v364, %v367
  %v371 = vmax.f32 %v365, %v368
  %v372 = vld [vmem:[%s1] sm:$0x3f]
  %374 = vset.pattern.permute.xlu0 0
  %375 = vperm.xlu0 %374, %v372
  %v376 = vpop.permute.xlu0 %375
  %v378 = vadd.f32 %v369, %v376
  %v379 = vadd.f32 %v370, %v376
  %v380 = vadd.f32 %v371, %v376
  %v381 = vmax.f32 %v378, 0.0
  %v382 = vmax.f32 %v379, 0.0
  %v383 = vmax.f32 %v380, 0.0
  %384 = vst [vmem:[%s3] sm:$0x3f] %v381
  %385 = vst [vmem:[%s3 + $0x8] sm:$0x3f] %v382
  %386 = vst [vmem:[%s3 + $0x10] sm:$0x3f] %v383
  // Predicated region
  $region14: #{cnn_forward.4} parent=0 // pred_check
    _
  $region15: #{cnn_forward.4} parent=0 // pred_check_branch
    %388 = sbr.rel (0) target = $region17
  $region16: #{cnn_forward.4} parent=0 // pred_region
    _
  $region17: #{cnn_forward.4} parent=0 // pred_fallthru
    _
  // Predicated region
  $region18: #{cnn_forward.4} parent=0 // pred_check
    _
  $region19: #{cnn_forward.4} parent=0 // pred_check_branch
    %390 = sbr.rel (0) target = $region21
  $region20: #{cnn_forward.4} parent=0 // pred_region
    _
  $region21: #{cnn_forward.4} parent=0 // pred_fallthru
    _

// kernel: cnn_forward.5
$region0: #{cnn_forward.5}
  #allocation0 [shape = 'u32[]', space=smem, size = 0x4, offset = 0x4, fixed_abs, tag = 'smem constant byte address 0x4 - core index']
  #allocation1 [shape = 'u32[144,128]{1,0:T(1,128)}', space=vmem, size = 0x12000, scoped, tag = 'internal scratch']
  #allocation2 [shape = 'f32[2,72]{1,0:T(2,128)}', space=vmem, size = 0x400, scoped, tag = 'scratch operand']
  %s0 = inlined_call_operand.vmem [shape: f32[96,24], index: 0, kind: input, shape index: {}]
  %s1 = inlined_call_operand.vmem [shape: f32[24,6], index: 1, kind: input, shape index: {}]
  %s2 = inlined_call_operand.vmem [shape: f32[1,6], index: 2, kind: input, shape index: {}]
  %s3 = inlined_call_operand.vmem [shape: f32[72,64], index: 3, kind: input, shape index: {}]
  %s4 = inlined_call_operand.vmem [shape: f32[1,64], index: 4, kind: input, shape index: {}]
  %s5 = inlined_call_operand.vmem [shape: f32[64,64], index: 5, kind: input, shape index: {}]
  %s6 = inlined_call_operand.vmem [shape: f32[1,64], index: 6, kind: input, shape index: {}]
  %s7 = inlined_call_operand.vmem [shape: f32[64,2], index: 7, kind: input, shape index: {}]
  %s8 = inlined_call_operand.vmem [shape: f32[1,2], index: 8, kind: input, shape index: {}]
  %s9 = inlined_call_operand.hbm [shape: f32[2,2], index: 9, kind: output, shape index: {}]
  %s10 = sld [smem:[#allocation0]]
  $region46: #{cnn_forward.5} parent=0
    _
  %s12 = ssub.s32 1, %s10
  %s13 = scalar_select 0, %s12, %s10
  $region1: #{cnn_forward.5} parent=0
    #allocation3 [shape = 'u8[1024]{0}', space=vmem, size = 0x400, scoped, tag = 'output window, operand 0, single buffered']
    #allocation4 [shape = 's32[1]{0}', space=sflag, size = 0x4, scoped, tag = 'scoped memory for cnn_forward.5']
    %14 = vsyncpa [#allocation4], 0
    // Predicated region
    $region2: #{cnn_forward.5} parent=1 // pred_check
      _
    $region3: #{cnn_forward.5} parent=1 // pred_check_branch
      %16 = sbr.rel (0) target = $region5
    $region4: #{cnn_forward.5} parent=1 // pred_region
      _
    $region5: #{cnn_forward.5} parent=1 // pred_fallthru
      _
    // Predicated region
    $region6: #{cnn_forward.5} parent=1 // pred_check
      _
    $region7: #{cnn_forward.5} parent=1 // pred_check_branch
      %18 = sbr.rel (0) target = $region9
    $region8: #{cnn_forward.5} parent=1 // pred_region
      _
    $region9: #{cnn_forward.5} parent=1 // pred_fallthru
      _
    // Predicated region
    $region10: #{cnn_forward.5} parent=1 // pred_check
      _
    $region11: #{cnn_forward.5} parent=1 // pred_check_branch
      %20 = sbr.rel (0) target = $region13
    $region12: #{cnn_forward.5} parent=1 // pred_region
      _
    $region13: #{cnn_forward.5} parent=1 // pred_fallthru
      _
    // Predicated region
    $region14: #{cnn_forward.5} parent=1 // pred_check
      _
    $region15: #{cnn_forward.5} parent=1 // pred_check_branch
      %22 = sbr.rel (0) target = $region17
    $region16: #{cnn_forward.5} parent=1 // pred_region
      _
    $region17: #{cnn_forward.5} parent=1 // pred_fallthru
      _
    // Predicated region
    $region18: #{cnn_forward.5} parent=1 // pred_check
      _
    $region19: #{cnn_forward.5} parent=1 // pred_check_branch
      %24 = sbr.rel (0) target = $region21
    $region20: #{cnn_forward.5} parent=1 // pred_region
      _
    $region21: #{cnn_forward.5} parent=1 // pred_fallthru
      _
    // Predicated region
    $region22: #{cnn_forward.5} parent=1 // pred_check
      _
    $region23: #{cnn_forward.5} parent=1 // pred_check_branch
      %26 = sbr.rel (0) target = $region25
    $region24: #{cnn_forward.5} parent=1 // pred_region
      _
    $region25: #{cnn_forward.5} parent=1 // pred_fallthru
      _
    // Predicated region
    $region26: #{cnn_forward.5} parent=1 // pred_check
      _
    $region27: #{cnn_forward.5} parent=1 // pred_check_branch
      %28 = sbr.rel (0) target = $region29
    $region28: #{cnn_forward.5} parent=1 // pred_region
      _
    $region29: #{cnn_forward.5} parent=1 // pred_fallthru
      _
    // Predicated region
    $region30: #{cnn_forward.5} parent=1 // pred_check
      _
    $region31: #{cnn_forward.5} parent=1 // pred_check_branch
      %30 = sbr.rel (0) target = $region33
    $region32: #{cnn_forward.5} parent=1 // pred_region
      _
    $region33: #{cnn_forward.5} parent=1 // pred_fallthru
      _
    // Predicated region
    $region34: #{cnn_forward.5} parent=1 // pred_check
      _
    $region35: #{cnn_forward.5} parent=1 // pred_check_branch
      %32 = sbr.rel (0) target = $region37
    $region36: #{cnn_forward.5} parent=1 // pred_region
      _
    $region37: #{cnn_forward.5} parent=1 // pred_fallthru
      _
    %v33 = vld [vmem:[%s0] sm:$0xff]
    %v34 = vld [vmem:[%s0 + $0x8] sm:$0xff]
    %v35 = vld [vmem:[%s0 + $0x10] sm:$0xff]
    %v36 = vld [vmem:[%s0 + $0x18] sm:$0xff]
    %v37 = vld [vmem:[%s0 + $0x20] sm:$0xff]
    %v38 = vld [vmem:[%s0 + $0x28] sm:$0xff]
    %v39 = vld [vmem:[%s0 + $0x30] sm:$0xff]
    %v40 = vld [vmem:[%s0 + $0x38] sm:$0xff]
    %v41 = vld [vmem:[%s0 + $0x40] sm:$0xff]
    %v42 = vld [vmem:[%s0 + $0x48] sm:$0xff]
    %v43 = vld [vmem:[%s0 + $0x50] sm:$0xff]
    %v44 = vld [vmem:[%s0 + $0x58] sm:$0xff]
    %v45 = vld [vmem:[%s1] sm:$0xff]
    %v46 = vld [vmem:[%s1 + $0x8] sm:$0xff]
    %v47 = vld [vmem:[%s1 + $0x10] sm:$0xff]
    %vm48 = vcmask 195584
    %v50 = vsel %vm48, %v33, 0
    %v53 = vsel %vm48, %v34, 0
    %v56 = vsel %vm48, %v35, 0
    %v59 = vsel %vm48, %v36, 0
    %v62 = vsel %vm48, %v37, 0
    %v65 = vsel %vm48, %v38, 0
    %v68 = vsel %vm48, %v39, 0
    %v71 = vsel %vm48, %v40, 0
    %v74 = vsel %vm48, %v41, 0
    %v77 = vsel %vm48, %v42, 0
    %v80 = vsel %vm48, %v43, 0
    %v83 = vsel %vm48, %v44, 0
    %85 = vmatprep.subr.mxu0 0.0
    %86 = vmatpush1.msra.mxu0 %v45
    %87 = vmatprep.subr.mxu0 0.0
    %88 = vmatpush1.msra.mxu0 %v46
    %89 = vmatprep.subr.mxu0 0.0
    %90 = vmatpush1.msra.mxu0 %v47
    %91 = vmatprep.subr.mxu0 0.0
    %92 = vmatpush1.msra.mxu0 0.0
    %93 = vmatprep.subr.mxu0 0.0
    %94 = vmatpush1.msra.mxu0 0.0
    %95 = vmatprep.subr.mxu0 0.0
    %96 = vmatpush1.msra.mxu0 0.0
    %97 = vmatprep.subr.mxu0 0.0
    %98 = vmatpush1.msra.mxu0 0.0
    %99 = vmatprep.subr.mxu0 0.0
    %100 = vmatpush1.msra.mxu0 0.0
    %101 = vmatprep.subr.mxu0 0.0
    %102 = vmatpush1.msra.mxu0 0.0
    %103 = vmatprep.subr.mxu0 0.0
    %104 = vmatpush1.msra.mxu0 0.0
    %105 = vmatprep.subr.mxu0 0.0
    %106 = vmatpush1.msra.mxu0 0.0
    %107 = vmatprep.subr.mxu0 0.0
    %108 = vmatpush1.msra.mxu0 0.0
    %109 = vmatprep.subr.mxu0 0.0
    %110 = vmatpush1.msra.mxu0 0.0
    %111 = vmatprep.subr.mxu0 0.0
    %112 = vmatpush1.msra.mxu0 0.0
    %113 = vmatprep.subr.mxu0 0.0
    %114 = vmatpush1.msra.mxu0 0.0
    %115 = vmatprep.subr.mxu0 0.0
    %116 = vmatpush1.msra.mxu0 0.0
    %117 = vmatprep.subr.mxu0 0.0
    %118 = vmatpush1.msra.mxu0 0.0
    %119 = vmatprep.subr.mxu0 0.0
    %120 = vmatpush1.msra.mxu0 0.0
    %121 = vmatprep.subr.mxu0 0.0
    %122 = vmatpush1.msra.mxu0 0.0
    %123 = vmatprep.subr.mxu0 0.0
    %124 = vmatpush1.msra.mxu0 0.0
    %125 = vmatprep.subr.mxu0 0.0
    %126 = vmatpush1.msra.mxu0 0.0
    %127 = vmatprep.subr.mxu0 0.0
    %128 = vmatpush1.msra.mxu0 0.0
    %129 = vmatprep.subr.mxu0 0.0
    %130 = vmatpush1.msra.mxu0 0.0
    %131 = vmatprep.subr.mxu0 0.0
    %132 = vmatpush1.msra.mxu0 0.0
    %133 = vmatprep.subr.mxu0 0.0
    %134 = vmatpush1.msra.mxu0 0.0
    %135 = vmatprep.subr.mxu0 0.0
    %136 = vmatpush1.msra.mxu0 0.0
    %137 = vmatprep.subr.mxu0 0.0
    %138 = vmatpush1.msra.mxu0 0.0
    %139 = vmatprep.subr.mxu0 0.0
    %140 = vmatpush1.msra.mxu0 0.0
    %141 = vmatprep.subr.mxu0 0.0
    %142 = vmatpush1.msra.mxu0 0.0
    %143 = vmatprep.subr.mxu0 0.0
    %144 = vmatpush1.msra.mxu0 0.0
    %145 = vmatprep.subr.mxu0 0.0
    %146 = vmatpush1.msra.mxu0 0.0
    %147 = vmatprep.subr.mxu0 0.0
    %148 = vmatpush1.msra.mxu0 0.0
    %149 = vmatprep.mubr.f32.mxu0 0.0
    %150 = vmatmul.mubr.f32.gmra.mrb[0].mxu0 %v50
    %v151 = vpop.f32.mrb[0].mxu0
    %v152 = vadd.f32 0.0, %v151
    %v153 = vpop.f32.mrb[0].mxu0
    %154 = vmatprep.mubr.f32.mxu0 0.0
    %155 = vmatmul.mubr.f32.gmra.mrb[0].mxu0 %v53
    %v156 = vpop.f32.mrb[0].mxu0
    %v157 = vadd.f32 0.0, %v156
    %v158 = vpop.f32.mrb[0].mxu0
    %159 = vmatprep.mubr.f32.mxu0 0.0
    %160 = vmatmul.mubr.f32.gmra.mrb[0].mxu0 %v56
    %v161 = vpop.f32.mrb[0].mxu0
    %v162 = vadd.f32 0.0, %v161
    %v163 = vpop.f32.mrb[0].mxu0
    %164 = vmatprep.mubr.f32.mxu0 0.0
    %165 = vmatmul.mubr.f32.gmra.mrb[0].mxu0 %v59
    %v166 = vpop.f32.mrb[0].mxu0
    %v167 = vadd.f32 0.0, %v166
    %v168 = vpop.f32.mrb[0].mxu0
    %169 = vmatprep.mubr.f32.mxu0 0.0
    %170 = vmatmul.mubr.f32.gmra.mrb[0].mxu0 %v62
    %v171 = vpop.f32.mrb[0].mxu0
    %v172 = vadd.f32 0.0, %v171
    %v173 = vpop.f32.mrb[0].mxu0
    %174 = vmatprep.mubr.f32.mxu0 0.0
    %175 = vmatmul.mubr.f32.gmra.mrb[0].mxu0 %v65
    %v176 = vpop.f32.mrb[0].mxu0
    %v177 = vadd.f32 0.0, %v176
    %v178 = vpop.f32.mrb[0].mxu0
    %179 = vmatprep.mubr.f32.mxu0 0.0
    %180 = vmatmul.mubr.f32.gmra.mrb[0].mxu0 %v68
    %v181 = vpop.f32.mrb[0].mxu0
    %v182 = vadd.f32 0.0, %v181
    %v183 = vpop.f32.mrb[0].mxu0
    %184 = vmatprep.mubr.f32.mxu0 0.0
    %185 = vmatmul.mubr.f32.gmra.mrb[0].mxu0 %v71
    %v186 = vpop.f32.mrb[0].mxu0
    %v187 = vadd.f32 0.0, %v186
    %v188 = vpop.f32.mrb[0].mxu0
    %189 = vmatprep.mubr.f32.mxu0 0.0
    %190 = vmatmul.mubr.f32.gmra.mrb[0].mxu0 %v74
    %v191 = vpop.f32.mrb[0].mxu0
    %v192 = vadd.f32 0.0, %v191
    %v193 = vpop.f32.mrb[0].mxu0
    %194 = vmatprep.mubr.f32.mxu0 0.0
    %195 = vmatmul.mubr.f32.gmra.mrb[0].mxu0 %v77
    %v196 = vpop.f32.mrb[0].mxu0
    %v197 = vadd.f32 0.0, %v196
    %v198 = vpop.f32.mrb[0].mxu0
    %199 = vmatprep.mubr.f32.mxu0 0.0
    %200 = vmatmul.mubr.f32.gmra.mrb[0].mxu0 %v80
    %v201 = vpop.f32.mrb[0].mxu0
    %v202 = vadd.f32 0.0, %v201
    %v203 = vpop.f32.mrb[0].mxu0
    %204 = vmatprep.mubr.f32.mxu0 0.0
    %205 = vmatmul.mubr.f32.gmra.mrb[0].mxu0 %v83
    %v206 = vpop.f32.mrb[0].mxu0
    %v207 = vadd.f32 0.0, %v206
    %v208 = vpop.f32.mrb[0].mxu0
    %209 = vdwg.mxu0
    %v210 = vmax.f32 %v152, %v167
    %v211 = vmax.f32 %v157, %v172
    %v212 = vmax.f32 %v162, %v177
    %v213 = vmax.f32 %v182, %v197
    %v214 = vmax.f32 %v187, %v202
    %v215 = vmax.f32 %v192, %v207
    %v216 = vmax.f32 %v210, %v213
    %v217 = vmax.f32 %v211, %v214
    %v218 = vmax.f32 %v212, %v215
    %v219 = vld [vmem:[%s2] sm:$0x1]
    %v221 = vlaneseq
    %v222 = vshrl.u32 %v221, 7
    %v223 = vsub.s32 0, %v222
    %v224 = vrot.slane %v219, %v223
    %v226 = vadd.f32 %v216, %v224
    %v227 = vadd.f32 %v217, %v224
    %v228 = vadd.f32 %v218, %v224
    %v229 = vmax.f32 %v226, 0.0
    %v230 = vmax.f32 %v227, 0.0
    %v231 = vmax.f32 %v228, 0.0
    %vm232 = vcmask 41984
    %233 = vst.msk [vmem:[#allocation2] sm:$0x3] %vm232, %v229
    %235 = vrot.lane.b32.xlu0 %v229, 6
    %v236 = vpop.permute.xlu0 %235
    %vm238 = vcmask 93234
    %239 = vst.msk [vmem:[#allocation2 - $0x2] sm:$0xc] %vm238, %v236
    %240 = vrot.lane.b32.xlu0 %v229, 12
    %v241 = vpop.permute.xlu0 %240
    %vm243 = vcmask 144484
    %244 = vst.msk [vmem:[#allocation2 - $0x4] sm:$0x30] %vm243, %v241
    %245 = vrot.lane.b32.xlu0 %v229, 18
    %v246 = vpop.permute.xlu0 %245
    %vm248 = vcmask 195734
    %249 = vst.msk [vmem:[#allocation2 - $0x6] sm:$0xc0] %vm248, %v246
    %251 = vrot.lane.b32.xlu0 %v230, 24
    %v252 = vpop.permute.xlu0 %251
    %vm254 = vcmask 238784
    %255 = vst.msk [vmem:[#allocation2] sm:$0x3] %vm254, %v252
    %256 = vrot.lane.b32.xlu0 %v230, 30
    %v257 = vpop.permute.xlu0 %256
    %vm259 = vcmask 290034
    %260 = vst.msk [vmem:[#allocation2 - $0x2] sm:$0xc] %vm259, %v257
    %261 = vrot.lane.b32.xlu0 %v230, 36
    %v262 = vpop.permute.xlu0 %261
    %vm264 = vcmask 341284
    %265 = vst.msk [vmem:[#allocation2 - $0x4] sm:$0x30] %vm264, %v262
    %266 = vrot.lane.b32.xlu0 %v230, 42
    %v267 = vpop.permute.xlu0 %266
    %vm269 = vcmask 392534
    %270 = vst.msk [vmem:[#allocation2 - $0x6] sm:$0xc0] %vm269, %v267
    %272 = vrot.lane.b32.xlu0 %v231, 48
    %v273 = vpop.permute.xlu0 %272
    %vm275 = vcmask 435584
    %276 = vst.msk [vmem:[#allocation2] sm:$0x3] %vm275, %v273
    %277 = vrot.lane.b32.xlu0 %v231, 54
    %v278 = vpop.permute.xlu0 %277
    %vm280 = vcmask 486834
    %281 = vst.msk [vmem:[#allocation2 - $0x2] sm:$0xc] %vm280, %v278
    %282 = vrot.lane.b32.xlu0 %v231, 60
    %v283 = vpop.permute.xlu0 %282
    %vm285 = vcmask 538084
    %286 = vst.msk [vmem:[#allocation2 - $0x4] sm:$0x30] %vm285, %v283
    %287 = vrot.lane.b32.xlu0 %v231, 66
    %v288 = vpop.permute.xlu0 %287
    %vm290 = vcmask 589334
    %291 = vst.msk [vmem:[#allocation2 - $0x6] sm:$0xc0] %vm290, %v288
    %v292 = vld [vmem:[#allocation2] sm:$0x3]
    %v293 = vld [vmem:[%s3] sm:$0xff]
    %v294 = vld [vmem:[%s3 + $0x8] sm:$0xff]
    %v295 = vld [vmem:[%s3 + $0x10] sm:$0xff]
    %v296 = vld [vmem:[%s3 + $0x18] sm:$0xff]
    %v297 = vld [vmem:[%s3 + $0x20] sm:$0xff]
    %v298 = vld [vmem:[%s3 + $0x28] sm:$0xff]
    %v299 = vld [vmem:[%s3 + $0x30] sm:$0xff]
    %v300 = vld [vmem:[%s3 + $0x38] sm:$0xff]
    %v301 = vld [vmem:[%s3 + $0x40] sm:$0xff]
    %v302 = vld [vmem:[%s4] sm:$0x1]
    %v304 = vlaneseq
    %v305 = vshrl.u32 %v304, 7
    %v306 = vsub.s32 0, %v305
    %v307 = vrot.slane %v302, %v306
    %vm309 = vcmask 588800
    %v311 = vsel %vm309, %v292, 0
    %313 = vmatprep.subr.mxu0 0.0
    %314 = vmatpush1.msra.mxu0 %v293
    %315 = vmatprep.subr.mxu0 0.0
    %316 = vmatpush1.msra.mxu0 %v294
    %317 = vmatprep.subr.mxu0 0.0
    %318 = vmatpush1.msra.mxu0 %v295
    %319 = vmatprep.subr.mxu0 0.0
    %320 = vmatpush1.msra.mxu0 %v296
    %321 = vmatprep.subr.mxu0 0.0
    %322 = vmatpush1.msra.mxu0 %v297
    %323 = vmatprep.subr.mxu0 0.0
    %324 = vmatpush1.msra.mxu0 %v298
    %325 = vmatprep.subr.mxu0 0.0
    %326 = vmatpush1.msra.mxu0 %v299
    %327 = vmatprep.subr.mxu0 0.0
    %328 = vmatpush1.msra.mxu0 %v300
    %329 = vmatprep.subr.mxu0 0.0
    %330 = vmatpush1.msra.mxu0 %v301
    %331 = vmatprep.subr.mxu0 0.0
    %332 = vmatpush1.msra.mxu0 0.0
    %333 = vmatprep.subr.mxu0 0.0
    %334 = vmatpush1.msra.mxu0 0.0
    %335 = vmatprep.subr.mxu0 0.0
    %336 = vmatpush1.msra.mxu0 0.0
    %337 = vmatprep.subr.mxu0 0.0
    %338 = vmatpush1.msra.mxu0 0.0
    %339 = vmatprep.subr.mxu0 0.0
    %340 = vmatpush1.msra.mxu0 0.0
    %341 = vmatprep.subr.mxu0 0.0
    %342 = vmatpush1.msra.mxu0 0.0
    %343 = vmatprep.subr.mxu0 0.0
    %344 = vmatpush1.msra.mxu0 0.0
    %345 = vmatprep.subr.mxu0 0.0
    %346 = vmatpush1.msra.mxu0 0.0
    %347 = vmatprep.subr.mxu0 0.0
    %348 = vmatpush1.msra.mxu0 0.0
    %349 = vmatprep.subr.mxu0 0.0
    %350 = vmatpush1.msra.mxu0 0.0
    %351 = vmatprep.subr.mxu0 0.0
    %352 = vmatpush1.msra.mxu0 0.0
    %353 = vmatprep.subr.mxu0 0.0
    %354 = vmatpush1.msra.mxu0 0.0
    %355 = vmatprep.subr.mxu0 0.0
    %356 = vmatpush1.msra.mxu0 0.0
    %357 = vmatprep.subr.mxu0 0.0
    %358 = vmatpush1.msra.mxu0 0.0
    %359 = vmatprep.subr.mxu0 0.0
    %360 = vmatpush1.msra.mxu0 0.0
    %361 = vmatprep.subr.mxu0 0.0
    %362 = vmatpush1.msra.mxu0 0.0
    %363 = vmatprep.subr.mxu0 0.0
    %364 = vmatpush1.msra.mxu0 0.0
    %365 = vmatprep.subr.mxu0 0.0
    %366 = vmatpush1.msra.mxu0 0.0
    %367 = vmatprep.subr.mxu0 0.0
    %368 = vmatpush1.msra.mxu0 0.0
    %369 = vmatprep.subr.mxu0 0.0
    %370 = vmatpush1.msra.mxu0 0.0
    %371 = vmatprep.subr.mxu0 0.0
    %372 = vmatpush1.msra.mxu0 0.0
    %373 = vmatprep.subr.mxu0 0.0
    %374 = vmatpush1.msra.mxu0 0.0
    %375 = vmatprep.subr.mxu0 0.0
    %376 = vmatpush1.msra.mxu0 0.0
    %377 = vmatprep.mubr.f32.mxu0 0.0
    %378 = vmatmul.mubr.f32.gmra.mrb[0].mxu0 %v311
    %v379 = vpop.f32.mrb[0].mxu0
    %v380 = vadd.f32 %v307, %v379
    %v381 = vpop.f32.mrb[0].mxu0
    %382 = vdwg.mxu0
    %v383 = vmax.f32 %v380, 0.0
    %v384 = vld [vmem:[%s5] sm:$0xff]
    %v385 = vld [vmem:[%s5 + $0x8] sm:$0xff]
    %v386 = vld [vmem:[%s5 + $0x10] sm:$0xff]
    %v387 = vld [vmem:[%s5 + $0x18] sm:$0xff]
    %v388 = vld [vmem:[%s5 + $0x20] sm:$0xff]
    %v389 = vld [vmem:[%s5 + $0x28] sm:$0xff]
    %v390 = vld [vmem:[%s5 + $0x30] sm:$0xff]
    %v391 = vld [vmem:[%s5 + $0x38] sm:$0xff]
    %v392 = vld [vmem:[%s6] sm:$0x1]
    %v394 = vlaneseq
    %v395 = vshrl.u32 %v394, 7
    %v396 = vsub.s32 0, %v395
    %v397 = vrot.slane %v392, %v396
    %vm399 = vcmask 523264
    %v401 = vsel %vm399, %v383, 0
    %403 = vmatprep.subr.mxu0 0.0
    %404 = vmatpush1.msra.mxu0 %v384
    %405 = vmatprep.subr.mxu0 0.0
    %406 = vmatpush1.msra.mxu0 %v385
    %407 = vmatprep.subr.mxu0 0.0
    %408 = vmatpush1.msra.mxu0 %v386
    %409 = vmatprep.subr.mxu0 0.0
    %410 = vmatpush1.msra.mxu0 %v387
    %411 = vmatprep.subr.mxu0 0.0
    %412 = vmatpush1.msra.mxu0 %v388
    %413 = vmatprep.subr.mxu0 0.0
    %414 = vmatpush1.msra.mxu0 %v389
    %415 = vmatprep.subr.mxu0 0.0
    %416 = vmatpush1.msra.mxu0 %v390
    %417 = vmatprep.subr.mxu0 0.0
    %418 = vmatpush1.msra.mxu0 %v391
    %419 = vmatprep.subr.mxu0 0.0
    %420 = vmatpush1.msra.mxu0 0.0
    %421 = vmatprep.subr.mxu0 0.0
    %422 = vmatpush1.msra.mxu0 0.0
    %423 = vmatprep.subr.mxu0 0.0
    %424 = vmatpush1.msra.mxu0 0.0
    %425 = vmatprep.subr.mxu0 0.0
    %426 = vmatpush1.msra.mxu0 0.0
    %427 = vmatprep.subr.mxu0 0.0
    %428 = vmatpush1.msra.mxu0 0.0
    %429 = vmatprep.subr.mxu0 0.0
    %430 = vmatpush1.msra.mxu0 0.0
    %431 = vmatprep.subr.mxu0 0.0
    %432 = vmatpush1.msra.mxu0 0.0
    %433 = vmatprep.subr.mxu0 0.0
    %434 = vmatpush1.msra.mxu0 0.0
    %435 = vmatprep.subr.mxu0 0.0
    %436 = vmatpush1.msra.mxu0 0.0
    %437 = vmatprep.subr.mxu0 0.0
    %438 = vmatpush1.msra.mxu0 0.0
    %439 = vmatprep.subr.mxu0 0.0
    %440 = vmatpush1.msra.mxu0 0.0
    %441 = vmatprep.subr.mxu0 0.0
    %442 = vmatpush1.msra.mxu0 0.0
    %443 = vmatprep.subr.mxu0 0.0
    %444 = vmatpush1.msra.mxu0 0.0
    %445 = vmatprep.subr.mxu0 0.0
    %446 = vmatpush1.msra.mxu0 0.0
    %447 = vmatprep.subr.mxu0 0.0
    %448 = vmatpush1.msra.mxu0 0.0
    %449 = vmatprep.subr.mxu0 0.0
    %450 = vmatpush1.msra.mxu0 0.0
    %451 = vmatprep.subr.mxu0 0.0
    %452 = vmatpush1.msra.mxu0 0.0
    %453 = vmatprep.subr.mxu0 0.0
    %454 = vmatpush1.msra.mxu0 0.0
    %455 = vmatprep.subr.mxu0 0.0
    %456 = vmatpush1.msra.mxu0 0.0
    %457 = vmatprep.subr.mxu0 0.0
    %458 = vmatpush1.msra.mxu0 0.0
    %459 = vmatprep.subr.mxu0 0.0
    %460 = vmatpush1.msra.mxu0 0.0
    %461 = vmatprep.subr.mxu0 0.0
    %462 = vmatpush1.msra.mxu0 0.0
    %463 = vmatprep.subr.mxu0 0.0
    %464 = vmatpush1.msra.mxu0 0.0
    %465 = vmatprep.subr.mxu0 0.0
    %466 = vmatpush1.msra.mxu0 0.0
    %467 = vmatprep.mubr.f32.mxu0 0.0
    %468 = vmatmul.mubr.f32.gmra.mrb[0].mxu0 %v401
    %v469 = vpop.f32.mrb[0].mxu0
    %v470 = vadd.f32 %v397, %v469
    %v471 = vpop.f32.mrb[0].mxu0
    %472 = vdwg.mxu0
    %v473 = vmax.f32 %v470, 0.0
    %v474 = vld [vmem:[%s7] sm:$0xff]
    %v475 = vld [vmem:[%s7 + $0x8] sm:$0xff]
    %v476 = vld [vmem:[%s7 + $0x10] sm:$0xff]
    %v477 = vld [vmem:[%s7 + $0x18] sm:$0xff]
    %v478 = vld [vmem:[%s7 + $0x20] sm:$0xff]
    %v479 = vld [vmem:[%s7 + $0x28] sm:$0xff]
    %v480 = vld [vmem:[%s7 + $0x30] sm:$0xff]
    %v481 = vld [vmem:[%s7 + $0x38] sm:$0xff]
    %v482 = vld [vmem:[%s8] sm:$0x1]
    %v484 = vlaneseq
    %v485 = vshrl.u32 %v484, 7
    %v486 = vsub.s32 0, %v485
    %v487 = vrot.slane %v482, %v486
    %v490 = vsel %vm399, %v473, 0
    %492 = vmatprep.subr.mxu0 0.0
    %493 = vmatpush1.msra.mxu0 %v474
    %494 = vmatprep.subr.mxu0 0.0
    %495 = vmatpush1.msra.mxu0 %v475
    %496 = vmatprep.subr.mxu0 0.0
    %497 = vmatpush1.msra.mxu0 %v476
    %498 = vmatprep.subr.mxu0 0.0
    %499 = vmatpush1.msra.mxu0 %v477
    %500 = vmatprep.subr.mxu0 0.0
    %501 = vmatpush1.msra.mxu0 %v478
    %502 = vmatprep.subr.mxu0 0.0
    %503 = vmatpush1.msra.mxu0 %v479
    %504 = vmatprep.subr.mxu0 0.0
    %505 = vmatpush1.msra.mxu0 %v480
    %506 = vmatprep.subr.mxu0 0.0
    %507 = vmatpush1.msra.mxu0 %v481
    %508 = vmatprep.subr.mxu0 0.0
    %509 = vmatpush1.msra.mxu0 0.0
    %510 = vmatprep.subr.mxu0 0.0
    %511 = vmatpush1.msra.mxu0 0.0
    %512 = vmatprep.subr.mxu0 0.0
    %513 = vmatpush1.msra.mxu0 0.0
    %514 = vmatprep.subr.mxu0 0.0
    %515 = vmatpush1.msra.mxu0 0.0
    %516 = vmatprep.subr.mxu0 0.0
    %517 = vmatpush1.msra.mxu0 0.0
    %518 = vmatprep.subr.mxu0 0.0
    %519 = vmatpush1.msra.mxu0 0.0
    %520 = vmatprep.subr.mxu0 0.0
    %521 = vmatpush1.msra.mxu0 0.0
    %522 = vmatprep.subr.mxu0 0.0
    %523 = vmatpush1.msra.mxu0 0.0
    %524 = vmatprep.subr.mxu0 0.0
    %525 = vmatpush1.msra.mxu0 0.0
    %526 = vmatprep.subr.mxu0 0.0
    %527 = vmatpush1.msra.mxu0 0.0
    %528 = vmatprep.subr.mxu0 0.0
    %529 = vmatpush1.msra.mxu0 0.0
    %530 = vmatprep.subr.mxu0 0.0
    %531 = vmatpush1.msra.mxu0 0.0
    %532 = vmatprep.subr.mxu0 0.0
    %533 = vmatpush1.msra.mxu0 0.0
    %534 = vmatprep.subr.mxu0 0.0
    %535 = vmatpush1.msra.mxu0 0.0
    %536 = vmatprep.subr.mxu0 0.0
    %537 = vmatpush1.msra.mxu0 0.0
    %538 = vmatprep.subr.mxu0 0.0
    %539 = vmatpush1.msra.mxu0 0.0
    %540 = vmatprep.subr.mxu0 0.0
    %541 = vmatpush1.msra.mxu0 0.0
    %542 = vmatprep.subr.mxu0 0.0
    %543 = vmatpush1.msra.mxu0 0.0
    %544 = vmatprep.subr.mxu0 0.0
    %545 = vmatpush1.msra.mxu0 0.0
    %546 = vmatprep.subr.mxu0 0.0
    %547 = vmatpush1.msra.mxu0 0.0
    %548 = vmatprep.subr.mxu0 0.0
    %549 = vmatpush1.msra.mxu0 0.0
    %550 = vmatprep.subr.mxu0 0.0
    %551 = vmatpush1.msra.mxu0 0.0
    %552 = vmatprep.subr.mxu0 0.0
    %553 = vmatpush1.msra.mxu0 0.0
    %554 = vmatprep.subr.mxu0 0.0
    %555 = vmatpush1.msra.mxu0 0.0
    %556 = vmatprep.mubr.f32.mxu0 0.0
    %557 = vmatmul.mubr.f32.gmra.mrb[0].mxu0 %v490
    %v558 = vpop.f32.mrb[0].mxu0
    %v559 = vadd.f32 %v487, %v558
    %v560 = vpop.f32.mrb[0].mxu0
    %561 = vdwg.mxu0
    %vm562 = vcmask 9216
    %563 = vst.msk [vmem:[#allocation3] sm:$0x3] %vm562, %v559
    // Predicated region
    $region38: #{cnn_forward.5} parent=1 // pred_check
      _
    $region39: #{cnn_forward.5} parent=1 // pred_check_branch
      %565 = sbr.rel (0) target = $region41
    $region40: #{cnn_forward.5} parent=1 // pred_region
      %s567 = ssub.s32 32, 32
      %568 = vsyncadd [#allocation4], %s567
      %s570 = sshll.u32 [#allocation3], 4
      %s571 = int_to_ptr.vmem [resolvable:$true] %s570
      %573 = dma.vmem_to_hbm [thread:$0]  %s571, 32, %s9, [#allocation4]
    $region41: #{cnn_forward.5} parent=1 // pred_fallthru
      _
    // Predicated region
    $region42: #{cnn_forward.5} parent=1 // pred_check
      _
    $region43: #{cnn_forward.5} parent=1 // pred_check_branch
      %575 = sbr.rel (0) target = $region45
    $region44: #{cnn_forward.5} parent=1 // pred_region
      %576 = dma.done [#allocation4], 32
    $region45: #{cnn_forward.5} parent=1 // pred_fallthru
      _
    %577 = vsyncpa [#allocation4], 1

</llo_original>
